<compile_context>
chip_gen: v7x
topology: tpu7x:2x2x1
jax: 0.10.0
libtpu: 0.0.40
codegen_flags: <defaults>
</compile_context>

<pallas_src>
import functools

import jax
import jax.numpy as jnp
from jax.experimental import pallas as pl
from jax.experimental.pallas import tpu as pltpu

_NODE_PAD = 512                      # node-axis padding granularity
_RESIDENT_X_BYTES = 8 * 1024 * 1024  # single-copy budget for VMEM-resident x


def _round_up(x, m):
    return ((x + m - 1) // m) * m


def _pad2d(a, rows, cols):
    out = jnp.zeros((rows, cols), a.dtype)
    return out.at[: a.shape[0], : a.shape[1]].set(a)


def _spmm_resident_kernel(a_ref, x_ref, o_ref):
    """o[i] += A[i, k] @ x ; x is whole-array VMEM-resident, sliced by k."""
    k = pl.program_id(1)
    tk = a_ref.shape[1]

    @pl.when(k == 0)
    def _():
        o_ref[...] = jnp.zeros_like(o_ref)

    start = pl.multiple_of(k * tk, tk)
    x_k = x_ref[pl.ds(start, tk), :]
    o_ref[...] += jnp.dot(
        a_ref[...].astype(jnp.float32), x_k, preferred_element_type=jnp.float32
    )


def _spmm_streamed_kernel(a_ref, x_ref, o_ref):
    """o[i] += A[i, k] @ x[k] ; x streamed in (tk, d) blocks."""
    k = pl.program_id(1)

    @pl.when(k == 0)
    def _():
        o_ref[...] = jnp.zeros_like(o_ref)

    o_ref[...] += jnp.dot(
        a_ref[...].astype(jnp.float32), x_ref[...],
        preferred_element_type=jnp.float32,
    )


def _pick_tiles(rows_pad, cols_pad):
    # Larger tiles when the padded axes allow it; keep >= 2 row tiles so the
    # "parallel" row axis can still be sharded across both v7x TensorCores.
    tm = 1024 if (rows_pad % 1024 == 0 and rows_pad >= 2048) else min(512, rows_pad)
    tk = 1024 if (cols_pad % 1024 == 0) else min(512, cols_pad)
    return tm, tk


def pallas_spmm(adj_p, x_p):
    """Computes adj_p @ x_p (f32 accumulation) with a tiled Pallas MXU kernel.

    adj_p: (R, C) bf16, R and C multiples of _NODE_PAD.
    x_p:   (C, D) f32, D a multiple of 128.
    Returns (R, D) f32.
    """
    r, c = adj_p.shape
    c2, d = x_p.shape
    assert c == c2, (c, c2)
    assert r % _NODE_PAD == 0 and c % _NODE_PAD == 0, (r, c)
    assert d % 128 == 0, d

    tm, tk = _pick_tiles(r, c)
    x_bytes = c * d * x_p.dtype.itemsize
    resident_x = x_bytes <= _RESIDENT_X_BYTES

    if resident_x:
        # Constant block index => x is DMA'd to VMEM once and never refetched.
        kernel = _spmm_resident_kernel
        x_spec = pl.BlockSpec((c, d), lambda i, k: (0, 0))
        x_buf_bytes = 2 * x_bytes                      # default double buffer
    else:
        kernel = _spmm_streamed_kernel
        x_spec = pl.BlockSpec((tk, d), lambda i, k: (k, 0))
        x_buf_bytes = 2 * tk * d * x_p.dtype.itemsize

    # Explicit VMEM budget: double-buffered adjacency + output tiles, the x
    # buffers and the in-kernel f32 upcast of the adjacency tile, plus slack.
    vmem_bytes = (
        2 * tm * tk * adj_p.dtype.itemsize   # adjacency double buffer (bf16)
        + tm * tk * 4                        # f32 upcast of the adjacency tile
        + 2 * tm * d * 4                     # output double buffer (f32)
        + x_buf_bytes
    )
    vmem_limit = min(max(vmem_bytes + (8 << 20), 32 << 20), 48 << 20)

    return pl.pallas_call(
        kernel,
        out_shape=jax.ShapeDtypeStruct((r, d), jnp.float32),
        grid_spec=pltpu.PrefetchScalarGridSpec(
            num_scalar_prefetch=0,
            grid=(r // tm, c // tk),              # rows (parallel), K (reduce)
            in_specs=[pl.BlockSpec((tm, tk), lambda i, k: (i, k)), x_spec],
            out_specs=pl.BlockSpec((tm, d), lambda i, k: (i, 0)),
        ),
        compiler_params=pltpu.CompilerParams(
            dimension_semantics=("parallel", "arbitrary"),
            vmem_limit_bytes=vmem_limit,
        ),
    )(adj_p, x_p)


def graph_conv_forward(user_embed, item_embed, interact_mat, *, n_hops, n_users,
                       mess_dropout=False, edge_dropout=False,
                       assume_bipartite=True):
    """Mirrors GraphConv.forward (deterministic; dropout disabled).

    assume_bipartite=True exploits the LightGCN structure (zero user-user and
    item-item blocks of interact_mat); set False for an arbitrary (N, N)
    propagation matrix (dense fallback path).
    """
    # TODO(synk): stochastic edge/message dropout is not reproduced.
    del mess_dropout, edge_dropout

    n_items = item_embed.shape[0]
    d = user_embed.shape[1]
    d_pad = _round_up(d, 128)

    if assume_bipartite:
        nu_pad = _round_up(n_users, _NODE_PAD)
        ni_pad = _round_up(n_items, _NODE_PAD)
        u = _pad2d(user_embed.astype(jnp.float32), nu_pad, d_pad)
        it = _pad2d(item_embed.astype(jnp.float32), ni_pad, d_pad)
        a_ui = _pad2d(interact_mat[:n_users, n_users:].astype(jnp.bfloat16),
                      nu_pad, ni_pad)
        a_iu = _pad2d(interact_mat[n_users:, :n_users].astype(jnp.bfloat16),
                      ni_pad, nu_pad)

        u_embs, i_embs = [u], [it]
        for _ in range(n_hops):
            u, it = pallas_spmm(a_ui, it), pallas_spmm(a_iu, u)
            u_embs.append(u)
            i_embs.append(it)

        u_out = jnp.stack(u_embs, axis=1)[:n_users, :, :d]
        i_out = jnp.stack(i_embs, axis=1)[:n_items, :, :d]
        return u_out.astype(user_embed.dtype), i_out.astype(item_embed.dtype)

    # Generic dense path (no structural assumption on interact_mat).
    n = n_users + n_items
    n_pad = _round_up(n, _NODE_PAD)
    adj = _pad2d(interact_mat.astype(jnp.bfloat16), n_pad, n_pad)
    agg = _pad2d(
        jnp.concatenate([user_embed, item_embed], axis=0).astype(jnp.float32),
        n_pad, d_pad)
    embs = [agg]
    for _ in range(n_hops):
        agg = pallas_spmm(adj, agg)
        embs.append(agg)
    embs = jnp.stack(embs, axis=1)[:n, :, :d].astype(user_embed.dtype)
    return embs[:n_users], embs[n_users:]


def make_interact_mat(key, n_users, n_items, dtype=jnp.float32):
    """Deterministic synthetic normalized bipartite adjacency, dense (N, N)."""
    n = n_users + n_items
    r = jax.random.uniform(key, (n_users, n_items))
    ui = (r < 0.3).astype(dtype)
    adj = jnp.zeros((n, n), dtype)
    adj = adj.at[:n_users, n_users:].set(ui)
    adj = adj.at[n_users:, :n_users].set(ui.T)
    # symmetric degree normalization D^-1/2 A D^-1/2 (LightGCN convention)
    deg = jnp.clip(adj.sum(axis=1), 1.0, None)
    d_inv_sqrt = 1.0 / jnp.sqrt(deg)
    return (adj * d_inv_sqrt[:, None]) * d_inv_sqrt[None, :]


if __name__ == "__main__":
    n_users, n_items, hidden, n_hops = 16, 48, 32, 3

    key = jax.random.PRNGKey(0)
    k_adj, k_u, k_i = jax.random.split(key, 3)

    interact_mat = make_interact_mat(k_adj, n_users, n_items)
    user_embed = jax.random.normal(k_u, (n_users, hidden), jnp.float32)
    item_embed = jax.random.normal(k_i, (n_items, hidden), jnp.float32)

    fwd = jax.jit(
        functools.partial(graph_conv_forward, n_hops=n_hops, n_users=n_users))
    user_out, item_out = fwd(user_embed, item_embed, interact_mat)
    jax.block_until_ready((user_out, item_out))

    assert user_out.shape == (n_users, n_hops + 1, hidden), user_out.shape
    assert item_out.shape == (n_items, n_hops + 1, hidden), item_out.shape

    # Plain-JAX reference mirroring the kernel's numerics: adjacency stored in
    # bf16 (upcast to f32 for the matmul), embeddings kept in f32 end-to-end.
    all_e = jnp.concatenate([user_embed, item_embed], axis=0)
    adj_q = interact_mat.astype(jnp.bfloat16).astype(jnp.float32)
    ref = [all_e]
    agg = all_e
    for _ in range(n_hops):
        agg = jnp.dot(adj_q, agg, preferred_element_type=jnp.float32)
        ref.append(agg)
    ref = jnp.stack(ref, axis=1)

    got = jnp.concatenate([user_out, item_out], axis=0)
    err = float(jnp.max(jnp.abs(got - ref)))
    assert jnp.allclose(got, ref, atol=2e-3, rtol=2e-3), err

    print("KERNEL_OK")
</pallas_src>

<mosaic_0001>
module attributes {stable_mosaic.version = 11 : i64} {
  func.func @_spmm_resident_kernel(%arg0: i32, %arg1: i32, %arg2: memref<512x512xbf16, #tpu.memory_space<vmem>>, %arg3: memref<512x128xf32, #tpu.memory_space<vmem>>, %arg4: memref<512x128xf32, #tpu.memory_space<vmem>>) attributes {dimension_semantics = [#tpu.dimension_semantics<parallel>, #tpu.dimension_semantics<arbitrary>], iteration_bounds = array<i64: 1, 1>, scalar_prefetch = 0 : i64, scratch_operands = 0 : i64, tpu.core_type = #tpu.core_type<tc>, window_params = [{transform_indices = @transform_0, window_bounds = array<i64: 512, 512>}, {pipeline_mode = #tpu.pipeline_mode<synchronous>, transform_indices = @transform_1, window_bounds = array<i64: 512, 128>}, {transform_indices = @transform_2, window_bounds = array<i64: 512, 128>}]} {
    %c0_i32 = arith.constant 0 : i32
    %0 = arith.cmpi eq, %arg1, %c0_i32 : i32
    %1 = arith.extui %0 : i1 to i32
    %c0_i32_0 = arith.constant 0 : i32
    %2 = arith.cmpi ne, %1, %c0_i32_0 : i32
    scf.if %2 {
      %cst_7 = arith.constant 0.000000e+00 : f32
      %13 = vector.broadcast %cst_7 : f32 to vector<512x128xf32>
      %c0_8 = arith.constant 0 : index
      %c0_9 = arith.constant 0 : index
      %14 = vector.load %arg4[%c0_8, %c0_9] : memref<512x128xf32, #tpu.memory_space<vmem>>, vector<512x128xf32>
      tpu.vector_store %arg4[%c0_8, %c0_9], %13 {strides = array<i32>} : memref<512x128xf32, #tpu.memory_space<vmem>>, vector<512x128xf32>,
    } else {
    }
    %c512_i32 = arith.constant 512 : i32
    %3 = arith.muli %arg1, %c512_i32 : i32
    %4 = tpu.assume_multiple %3, 512 : i32
    %5 = arith.index_cast %4 : i32 to index
    %c0 = arith.constant 0 : index
    %6 = vector.load %arg3[%5, %c0] : memref<512x128xf32, #tpu.memory_space<vmem>>, vector<512x128xf32>
    %c0_1 = arith.constant 0 : index
    %c0_2 = arith.constant 0 : index
    %7 = vector.load %arg4[%c0_1, %c0_2] : memref<512x128xf32, #tpu.memory_space<vmem>>, vector<512x128xf32>
    %c0_3 = arith.constant 0 : index
    %c0_4 = arith.constant 0 : index
    %8 = vector.load %arg2[%c0_3, %c0_4] : memref<512x512xbf16, #tpu.memory_space<vmem>>, vector<512x512xbf16>
    %9 = arith.extf %8 : vector<512x512xbf16> to vector<512x512xf32>
    %cst = arith.constant dense<0.000000e+00> : vector<512x128xf32>
    %10 = tpu.matmul %9, %6, %cst {dimension_numbers = #tpu.dot_dimension_numbers<[1], [0], [0], [1], [0, 0, 1, 1], [], []>} : vector<512x512xf32>, vector<512x128xf32>, vector<512x128xf32> -> vector<512x128xf32>
    %11 = arith.addf %7, %10 : vector<512x128xf32>
    %c0_5 = arith.constant 0 : index
    %c0_6 = arith.constant 0 : index
    %12 = vector.load %arg4[%c0_5, %c0_6] : memref<512x128xf32, #tpu.memory_space<vmem>>, vector<512x128xf32>
    tpu.vector_store %arg4[%c0_5, %c0_6], %11 {strides = array<i32>} : memref<512x128xf32, #tpu.memory_space<vmem>>, vector<512x128xf32>,
    return
  }
  func.func @transform_0(%arg0: i32, %arg1: i32) -> (i32, i32) {
    %c0_i32 = arith.constant 0 : i32
    return %arg0, %arg1 : i32, i32
  }
  func.func @transform_1(%arg0: i32, %arg1: i32) -> (i32, i32) {
    %c0_i32 = arith.constant 0 : i32
    %c0_i32_0 = arith.constant 0 : i32
    %c0_i32_1 = arith.constant 0 : i32
    return %c0_i32, %c0_i32_0 : i32, i32
  }
  func.func @transform_2(%arg0: i32, %arg1: i32) -> (i32, i32) {
    %c0_i32 = arith.constant 0 : i32
    %c0_i32_0 = arith.constant 0 : i32
    return %arg0, %c0_i32 : i32, i32
  }
}

</mosaic_0001>

<llo_original>
// kernel: graph_conv_forward.7
$region0: #{graph_conv_forward.7}
  #allocation0 [shape = 'u32[]', space=smem, size = 0x4, offset = 0x4, fixed_abs, tag = 'smem constant byte address 0x4 - core index']
  #allocation1 [shape = 'u32[144,128]{1,0:T(1,128)}', space=vmem, size = 0x12000, scoped, tag = 'internal scratch']
  %s0 = inlined_call_operand.vmem [shape: bf16[512,512], index: 0, kind: input, shape index: {}]
  %s1 = inlined_call_operand.vmem [shape: f32[512,128], index: 1, kind: input, shape index: {}]
  %s2 = inlined_call_operand.vmem [shape: f32[512,128], index: 2, kind: output, shape index: {}]
  %s3 = sld [smem:[#allocation0]]
  $region22: #{graph_conv_forward.7} parent=0
    _
  %s5 = ssub.s32 1, %s3
  %s6 = scalar_select 0, %s5, %s3
  // Predicated region
  $region2: #{graph_conv_forward.7} parent=0 // pred_check
    _
  $region3: #{graph_conv_forward.7} parent=0 // pred_check_branch
    %8 = sbr.rel (0) target = $region5
  $region4: #{graph_conv_forward.7} parent=0 // pred_region
    _
  $region5: #{graph_conv_forward.7} parent=0 // pred_fallthru
    _
  // Predicated region
  $region6: #{graph_conv_forward.7} parent=0 // pred_check
    _
  $region7: #{graph_conv_forward.7} parent=0 // pred_check_branch
    %10 = sbr.rel (0) target = $region9
  $region8: #{graph_conv_forward.7} parent=0 // pred_region
    _
  $region9: #{graph_conv_forward.7} parent=0 // pred_fallthru
    _
  %p11 = scmp.eq.s32.totalorder 0, 0
  // Predicated region
  $region10: #{graph_conv_forward.7} parent=0 // pred_check
    %p12 = pneg %p11
  $region11: #{graph_conv_forward.7} parent=0 // pred_check_branch
    %14 = sbr.rel (%p12) target = $region13
  $region12: #{graph_conv_forward.7} parent=0 // pred_region
    %15 = vst [vmem:[%s2] sm:$0xff] 0.0
    %16 = vst [vmem:[%s2 + $0x8] sm:$0xff] 0.0
    %17 = vst [vmem:[%s2 + $0x10] sm:$0xff] 0.0
    %18 = vst [vmem:[%s2 + $0x18] sm:$0xff] 0.0
    %19 = vst [vmem:[%s2 + $0x20] sm:$0xff] 0.0
    %20 = vst [vmem:[%s2 + $0x28] sm:$0xff] 0.0
    %21 = vst [vmem:[%s2 + $0x30] sm:$0xff] 0.0
    %22 = vst [vmem:[%s2 + $0x38] sm:$0xff] 0.0
    %23 = vst [vmem:[%s2 + $0x40] sm:$0xff] 0.0
    %24 = vst [vmem:[%s2 + $0x48] sm:$0xff] 0.0
    %25 = vst [vmem:[%s2 + $0x50] sm:$0xff] 0.0
    %26 = vst [vmem:[%s2 + $0x58] sm:$0xff] 0.0
    %27 = vst [vmem:[%s2 + $0x60] sm:$0xff] 0.0
    %28 = vst [vmem:[%s2 + $0x68] sm:$0xff] 0.0
    %29 = vst [vmem:[%s2 + $0x70] sm:$0xff] 0.0
    %30 = vst [vmem:[%s2 + $0x78] sm:$0xff] 0.0
    %31 = vst [vmem:[%s2 + $0x80] sm:$0xff] 0.0
    %32 = vst [vmem:[%s2 + $0x88] sm:$0xff] 0.0
    %33 = vst [vmem:[%s2 + $0x90] sm:$0xff] 0.0
    %34 = vst [vmem:[%s2 + $0x98] sm:$0xff] 0.0
    %35 = vst [vmem:[%s2 + $0xa0] sm:$0xff] 0.0
    %36 = vst [vmem:[%s2 + $0xa8] sm:$0xff] 0.0
    %37 = vst [vmem:[%s2 + $0xb0] sm:$0xff] 0.0
    %38 = vst [vmem:[%s2 + $0xb8] sm:$0xff] 0.0
    %39 = vst [vmem:[%s2 + $0xc0] sm:$0xff] 0.0
    %40 = vst [vmem:[%s2 + $0xc8] sm:$0xff] 0.0
    %41 = vst [vmem:[%s2 + $0xd0] sm:$0xff] 0.0
    %42 = vst [vmem:[%s2 + $0xd8] sm:$0xff] 0.0
    %43 = vst [vmem:[%s2 + $0xe0] sm:$0xff] 0.0
    %44 = vst [vmem:[%s2 + $0xe8] sm:$0xff] 0.0
    %45 = vst [vmem:[%s2 + $0xf0] sm:$0xff] 0.0
    %46 = vst [vmem:[%s2 + $0xf8] sm:$0xff] 0.0
    %47 = vst [vmem:[%s2 + $0x100] sm:$0xff] 0.0
    %48 = vst [vmem:[%s2 + $0x108] sm:$0xff] 0.0
    %49 = vst [vmem:[%s2 + $0x110] sm:$0xff] 0.0
    %50 = vst [vmem:[%s2 + $0x118] sm:$0xff] 0.0
    %51 = vst [vmem:[%s2 + $0x120] sm:$0xff] 0.0
    %52 = vst [vmem:[%s2 + $0x128] sm:$0xff] 0.0
    %53 = vst [vmem:[%s2 + $0x130] sm:$0xff] 0.0
    %54 = vst [vmem:[%s2 + $0x138] sm:$0xff] 0.0
    %55 = vst [vmem:[%s2 + $0x140] sm:$0xff] 0.0
    %56 = vst [vmem:[%s2 + $0x148] sm:$0xff] 0.0
    %57 = vst [vmem:[%s2 + $0x150] sm:$0xff] 0.0
    %58 = vst [vmem:[%s2 + $0x158] sm:$0xff] 0.0
    %59 = vst [vmem:[%s2 + $0x160] sm:$0xff] 0.0
    %60 = vst [vmem:[%s2 + $0x168] sm:$0xff] 0.0
    %61 = vst [vmem:[%s2 + $0x170] sm:$0xff] 0.0
    %62 = vst [vmem:[%s2 + $0x178] sm:$0xff] 0.0
    %63 = vst [vmem:[%s2 + $0x180] sm:$0xff] 0.0
    %64 = vst [vmem:[%s2 + $0x188] sm:$0xff] 0.0
    %65 = vst [vmem:[%s2 + $0x190] sm:$0xff] 0.0
    %66 = vst [vmem:[%s2 + $0x198] sm:$0xff] 0.0
    %67 = vst [vmem:[%s2 + $0x1a0] sm:$0xff] 0.0
    %68 = vst [vmem:[%s2 + $0x1a8] sm:$0xff] 0.0
    %69 = vst [vmem:[%s2 + $0x1b0] sm:$0xff] 0.0
    %70 = vst [vmem:[%s2 + $0x1b8] sm:$0xff] 0.0
    %71 = vst [vmem:[%s2 + $0x1c0] sm:$0xff] 0.0
    %72 = vst [vmem:[%s2 + $0x1c8] sm:$0xff] 0.0
    %73 = vst [vmem:[%s2 + $0x1d0] sm:$0xff] 0.0
    %74 = vst [vmem:[%s2 + $0x1d8] sm:$0xff] 0.0
    %75 = vst [vmem:[%s2 + $0x1e0] sm:$0xff] 0.0
    %76 = vst [vmem:[%s2 + $0x1e8] sm:$0xff] 0.0
    %77 = vst [vmem:[%s2 + $0x1f0] sm:$0xff] 0.0
    %78 = vst [vmem:[%s2 + $0x1f8] sm:$0xff] 0.0
  $region13: #{graph_conv_forward.7} parent=0 // pred_fallthru
    _
  %s79 = smul.u32 0, 512
  %s80 = scalar_lea.vmem %s1, %s79
  %v81 = vld [vmem:[%s80] sm:$0xff]
  %v82 = vld [vmem:[%s80 + $0x8] sm:$0xff]
  %v83 = vld [vmem:[%s80 + $0x10] sm:$0xff]
  %v84 = vld [vmem:[%s80 + $0x18] sm:$0xff]
  %v85 = vld [vmem:[%s80 + $0x20] sm:$0xff]
  %v86 = vld [vmem:[%s80 + $0x28] sm:$0xff]
  %v87 = vld [vmem:[%s80 + $0x30] sm:$0xff]
  %v88 = vld [vmem:[%s80 + $0x38] sm:$0xff]
  %v89 = vld [vmem:[%s80 + $0x40] sm:$0xff]
  %v90 = vld [vmem:[%s80 + $0x48] sm:$0xff]
  %v91 = vld [vmem:[%s80 + $0x50] sm:$0xff]
  %v92 = vld [vmem:[%s80 + $0x58] sm:$0xff]
  %v93 = vld [vmem:[%s80 + $0x60] sm:$0xff]
  %v94 = vld [vmem:[%s80 + $0x68] sm:$0xff]
  %v95 = vld [vmem:[%s80 + $0x70] sm:$0xff]
  %v96 = vld [vmem:[%s80 + $0x78] sm:$0xff]
  %v97 = vld [vmem:[%s80 + $0x80] sm:$0xff]
  %v98 = vld [vmem:[%s80 + $0x88] sm:$0xff]
  %v99 = vld [vmem:[%s80 + $0x90] sm:$0xff]
  %v100 = vld [vmem:[%s80 + $0x98] sm:$0xff]
  %v101 = vld [vmem:[%s80 + $0xa0] sm:$0xff]
  %v102 = vld [vmem:[%s80 + $0xa8] sm:$0xff]
  %v103 = vld [vmem:[%s80 + $0xb0] sm:$0xff]
  %v104 = vld [vmem:[%s80 + $0xb8] sm:$0xff]
  %v105 = vld [vmem:[%s80 + $0xc0] sm:$0xff]
  %v106 = vld [vmem:[%s80 + $0xc8] sm:$0xff]
  %v107 = vld [vmem:[%s80 + $0xd0] sm:$0xff]
  %v108 = vld [vmem:[%s80 + $0xd8] sm:$0xff]
  %v109 = vld [vmem:[%s80 + $0xe0] sm:$0xff]
  %v110 = vld [vmem:[%s80 + $0xe8] sm:$0xff]
  %v111 = vld [vmem:[%s80 + $0xf0] sm:$0xff]
  %v112 = vld [vmem:[%s80 + $0xf8] sm:$0xff]
  %v113 = vld [vmem:[%s80 + $0x100] sm:$0xff]
  %v114 = vld [vmem:[%s80 + $0x108] sm:$0xff]
  %v115 = vld [vmem:[%s80 + $0x110] sm:$0xff]
  %v116 = vld [vmem:[%s80 + $0x118] sm:$0xff]
  %v117 = vld [vmem:[%s80 + $0x120] sm:$0xff]
  %v118 = vld [vmem:[%s80 + $0x128] sm:$0xff]
  %v119 = vld [vmem:[%s80 + $0x130] sm:$0xff]
  %v120 = vld [vmem:[%s80 + $0x138] sm:$0xff]
  %v121 = vld [vmem:[%s80 + $0x140] sm:$0xff]
  %v122 = vld [vmem:[%s80 + $0x148] sm:$0xff]
  %v123 = vld [vmem:[%s80 + $0x150] sm:$0xff]
  %v124 = vld [vmem:[%s80 + $0x158] sm:$0xff]
  %v125 = vld [vmem:[%s80 + $0x160] sm:$0xff]
  %v126 = vld [vmem:[%s80 + $0x168] sm:$0xff]
  %v127 = vld [vmem:[%s80 + $0x170] sm:$0xff]
  %v128 = vld [vmem:[%s80 + $0x178] sm:$0xff]
  %v129 = vld [vmem:[%s80 + $0x180] sm:$0xff]
  %v130 = vld [vmem:[%s80 + $0x188] sm:$0xff]
  %v131 = vld [vmem:[%s80 + $0x190] sm:$0xff]
  %v132 = vld [vmem:[%s80 + $0x198] sm:$0xff]
  %v133 = vld [vmem:[%s80 + $0x1a0] sm:$0xff]
  %v134 = vld [vmem:[%s80 + $0x1a8] sm:$0xff]
  %v135 = vld [vmem:[%s80 + $0x1b0] sm:$0xff]
  %v136 = vld [vmem:[%s80 + $0x1b8] sm:$0xff]
  %v137 = vld [vmem:[%s80 + $0x1c0] sm:$0xff]
  %v138 = vld [vmem:[%s80 + $0x1c8] sm:$0xff]
  %v139 = vld [vmem:[%s80 + $0x1d0] sm:$0xff]
  %v140 = vld [vmem:[%s80 + $0x1d8] sm:$0xff]
  %v141 = vld [vmem:[%s80 + $0x1e0] sm:$0xff]
  %v142 = vld [vmem:[%s80 + $0x1e8] sm:$0xff]
  %v143 = vld [vmem:[%s80 + $0x1f0] sm:$0xff]
  %v144 = vld [vmem:[%s80 + $0x1f8] sm:$0xff]
  %v145 = vld [vmem:[%s2] sm:$0xff]
  %v146 = vld [vmem:[%s2 + $0x8] sm:$0xff]
  %v147 = vld [vmem:[%s2 + $0x10] sm:$0xff]
  %v148 = vld [vmem:[%s2 + $0x18] sm:$0xff]
  %v149 = vld [vmem:[%s2 + $0x20] sm:$0xff]
  %v150 = vld [vmem:[%s2 + $0x28] sm:$0xff]
  %v151 = vld [vmem:[%s2 + $0x30] sm:$0xff]
  %v152 = vld [vmem:[%s2 + $0x38] sm:$0xff]
  %v153 = vld [vmem:[%s2 + $0x40] sm:$0xff]
  %v154 = vld [vmem:[%s2 + $0x48] sm:$0xff]
  %v155 = vld [vmem:[%s2 + $0x50] sm:$0xff]
  %v156 = vld [vmem:[%s2 + $0x58] sm:$0xff]
  %v157 = vld [vmem:[%s2 + $0x60] sm:$0xff]
  %v158 = vld [vmem:[%s2 + $0x68] sm:$0xff]
  %v159 = vld [vmem:[%s2 + $0x70] sm:$0xff]
  %v160 = vld [vmem:[%s2 + $0x78] sm:$0xff]
  %v161 = vld [vmem:[%s2 + $0x80] sm:$0xff]
  %v162 = vld [vmem:[%s2 + $0x88] sm:$0xff]
  %v163 = vld [vmem:[%s2 + $0x90] sm:$0xff]
  %v164 = vld [vmem:[%s2 + $0x98] sm:$0xff]
  %v165 = vld [vmem:[%s2 + $0xa0] sm:$0xff]
  %v166 = vld [vmem:[%s2 + $0xa8] sm:$0xff]
  %v167 = vld [vmem:[%s2 + $0xb0] sm:$0xff]
  %v168 = vld [vmem:[%s2 + $0xb8] sm:$0xff]
  %v169 = vld [vmem:[%s2 + $0xc0] sm:$0xff]
  %v170 = vld [vmem:[%s2 + $0xc8] sm:$0xff]
  %v171 = vld [vmem:[%s2 + $0xd0] sm:$0xff]
  %v172 = vld [vmem:[%s2 + $0xd8] sm:$0xff]
  %v173 = vld [vmem:[%s2 + $0xe0] sm:$0xff]
  %v174 = vld [vmem:[%s2 + $0xe8] sm:$0xff]
  %v175 = vld [vmem:[%s2 + $0xf0] sm:$0xff]
  %v176 = vld [vmem:[%s2 + $0xf8] sm:$0xff]
  %v177 = vld [vmem:[%s2 + $0x100] sm:$0xff]
  %v178 = vld [vmem:[%s2 + $0x108] sm:$0xff]
  %v179 = vld [vmem:[%s2 + $0x110] sm:$0xff]
  %v180 = vld [vmem:[%s2 + $0x118] sm:$0xff]
  %v181 = vld [vmem:[%s2 + $0x120] sm:$0xff]
  %v182 = vld [vmem:[%s2 + $0x128] sm:$0xff]
  %v183 = vld [vmem:[%s2 + $0x130] sm:$0xff]
  %v184 = vld [vmem:[%s2 + $0x138] sm:$0xff]
  %v185 = vld [vmem:[%s2 + $0x140] sm:$0xff]
  %v186 = vld [vmem:[%s2 + $0x148] sm:$0xff]
  %v187 = vld [vmem:[%s2 + $0x150] sm:$0xff]
  %v188 = vld [vmem:[%s2 + $0x158] sm:$0xff]
  %v189 = vld [vmem:[%s2 + $0x160] sm:$0xff]
  %v190 = vld [vmem:[%s2 + $0x168] sm:$0xff]
  %v191 = vld [vmem:[%s2 + $0x170] sm:$0xff]
  %v192 = vld [vmem:[%s2 + $0x178] sm:$0xff]
  %v193 = vld [vmem:[%s2 + $0x180] sm:$0xff]
  %v194 = vld [vmem:[%s2 + $0x188] sm:$0xff]
  %v195 = vld [vmem:[%s2 + $0x190] sm:$0xff]
  %v196 = vld [vmem:[%s2 + $0x198] sm:$0xff]
  %v197 = vld [vmem:[%s2 + $0x1a0] sm:$0xff]
  %v198 = vld [vmem:[%s2 + $0x1a8] sm:$0xff]
  %v199 = vld [vmem:[%s2 + $0x1b0] sm:$0xff]
  %v200 = vld [vmem:[%s2 + $0x1b8] sm:$0xff]
  %v201 = vld [vmem:[%s2 + $0x1c0] sm:$0xff]
  %v202 = vld [vmem:[%s2 + $0x1c8] sm:$0xff]
  %v203 = vld [vmem:[%s2 + $0x1d0] sm:$0xff]
  %v204 = vld [vmem:[%s2 + $0x1d8] sm:$0xff]
  %v205 = vld [vmem:[%s2 + $0x1e0] sm:$0xff]
  %v206 = vld [vmem:[%s2 + $0x1e8] sm:$0xff]
  %v207 = vld [vmem:[%s2 + $0x1f0] sm:$0xff]
  %v208 = vld [vmem:[%s2 + $0x1f8] sm:$0xff]
  %v209 = vld [vmem:[%s0] sm:$0xff]
  %v210 = vld [vmem:[%s0 + $0x8] sm:$0xff]
  %v211 = vld [vmem:[%s0 + $0x10] sm:$0xff]
  %v212 = vld [vmem:[%s0 + $0x18] sm:$0xff]
  %v213 = vld [vmem:[%s0 + $0x20] sm:$0xff]
  %v214 = vld [vmem:[%s0 + $0x28] sm:$0xff]
  %v215 = vld [vmem:[%s0 + $0x30] sm:$0xff]
  %v216 = vld [vmem:[%s0 + $0x38] sm:$0xff]
  %v217 = vld [vmem:[%s0 + $0x40] sm:$0xff]
  %v218 = vld [vmem:[%s0 + $0x48] sm:$0xff]
  %v219 = vld [vmem:[%s0 + $0x50] sm:$0xff]
  %v220 = vld [vmem:[%s0 + $0x58] sm:$0xff]
  %v221 = vld [vmem:[%s0 + $0x60] sm:$0xff]
  %v222 = vld [vmem:[%s0 + $0x68] sm:$0xff]
  %v223 = vld [vmem:[%s0 + $0x70] sm:$0xff]
  %v224 = vld [vmem:[%s0 + $0x78] sm:$0xff]
  %v225 = vld [vmem:[%s0 + $0x80] sm:$0xff]
  %v226 = vld [vmem:[%s0 + $0x88] sm:$0xff]
  %v227 = vld [vmem:[%s0 + $0x90] sm:$0xff]
  %v228 = vld [vmem:[%s0 + $0x98] sm:$0xff]
  %v229 = vld [vmem:[%s0 + $0xa0] sm:$0xff]
  %v230 = vld [vmem:[%s0 + $0xa8] sm:$0xff]
  %v231 = vld [vmem:[%s0 + $0xb0] sm:$0xff]
  %v232 = vld [vmem:[%s0 + $0xb8] sm:$0xff]
  %v233 = vld [vmem:[%s0 + $0xc0] sm:$0xff]
  %v234 = vld [vmem:[%s0 + $0xc8] sm:$0xff]
  %v235 = vld [vmem:[%s0 + $0xd0] sm:$0xff]
  %v236 = vld [vmem:[%s0 + $0xd8] sm:$0xff]
  %v237 = vld [vmem:[%s0 + $0xe0] sm:$0xff]
  %v238 = vld [vmem:[%s0 + $0xe8] sm:$0xff]
  %v239 = vld [vmem:[%s0 + $0xf0] sm:$0xff]
  %v240 = vld [vmem:[%s0 + $0xf8] sm:$0xff]
  %v241 = vld [vmem:[%s0 + $0x100] sm:$0xff]
  %v242 = vld [vmem:[%s0 + $0x108] sm:$0xff]
  %v243 = vld [vmem:[%s0 + $0x110] sm:$0xff]
  %v244 = vld [vmem:[%s0 + $0x118] sm:$0xff]
  %v245 = vld [vmem:[%s0 + $0x120] sm:$0xff]
  %v246 = vld [vmem:[%s0 + $0x128] sm:$0xff]
  %v247 = vld [vmem:[%s0 + $0x130] sm:$0xff]
  %v248 = vld [vmem:[%s0 + $0x138] sm:$0xff]
  %v249 = vld [vmem:[%s0 + $0x140] sm:$0xff]
  %v250 = vld [vmem:[%s0 + $0x148] sm:$0xff]
  %v251 = vld [vmem:[%s0 + $0x150] sm:$0xff]
  %v252 = vld [vmem:[%s0 + $0x158] sm:$0xff]
  %v253 = vld [vmem:[%s0 + $0x160] sm:$0xff]
  %v254 = vld [vmem:[%s0 + $0x168] sm:$0xff]
  %v255 = vld [vmem:[%s0 + $0x170] sm:$0xff]
  %v256 = vld [vmem:[%s0 + $0x178] sm:$0xff]
  %v257 = vld [vmem:[%s0 + $0x180] sm:$0xff]
  %v258 = vld [vmem:[%s0 + $0x188] sm:$0xff]
  %v259 = vld [vmem:[%s0 + $0x190] sm:$0xff]
  %v260 = vld [vmem:[%s0 + $0x198] sm:$0xff]
  %v261 = vld [vmem:[%s0 + $0x1a0] sm:$0xff]
  %v262 = vld [vmem:[%s0 + $0x1a8] sm:$0xff]
  %v263 = vld [vmem:[%s0 + $0x1b0] sm:$0xff]
  %v264 = vld [vmem:[%s0 + $0x1b8] sm:$0xff]
  %v265 = vld [vmem:[%s0 + $0x1c0] sm:$0xff]
  %v266 = vld [vmem:[%s0 + $0x1c8] sm:$0xff]
  %v267 = vld [vmem:[%s0 + $0x1d0] sm:$0xff]
  %v268 = vld [vmem:[%s0 + $0x1d8] sm:$0xff]
  %v269 = vld [vmem:[%s0 + $0x1e0] sm:$0xff]
  %v270 = vld [vmem:[%s0 + $0x1e8] sm:$0xff]
  %v271 = vld [vmem:[%s0 + $0x1f0] sm:$0xff]
  %v272 = vld [vmem:[%s0 + $0x1f8] sm:$0xff]
  %v273 = vld [vmem:[%s0 + $0x200] sm:$0xff]
  %v274 = vld [vmem:[%s0 + $0x208] sm:$0xff]
  %v275 = vld [vmem:[%s0 + $0x210] sm:$0xff]
  %v276 = vld [vmem:[%s0 + $0x218] sm:$0xff]
  %v277 = vld [vmem:[%s0 + $0x220] sm:$0xff]
  %v278 = vld [vmem:[%s0 + $0x228] sm:$0xff]
  %v279 = vld [vmem:[%s0 + $0x230] sm:$0xff]
  %v280 = vld [vmem:[%s0 + $0x238] sm:$0xff]
  %v281 = vld [vmem:[%s0 + $0x240] sm:$0xff]
  %v282 = vld [vmem:[%s0 + $0x248] sm:$0xff]
  %v283 = vld [vmem:[%s0 + $0x250] sm:$0xff]
  %v284 = vld [vmem:[%s0 + $0x258] sm:$0xff]
  %v285 = vld [vmem:[%s0 + $0x260] sm:$0xff]
  %v286 = vld [vmem:[%s0 + $0x268] sm:$0xff]
  %v287 = vld [vmem:[%s0 + $0x270] sm:$0xff]
  %v288 = vld [vmem:[%s0 + $0x278] sm:$0xff]
  %v289 = vld [vmem:[%s0 + $0x280] sm:$0xff]
  %v290 = vld [vmem:[%s0 + $0x288] sm:$0xff]
  %v291 = vld [vmem:[%s0 + $0x290] sm:$0xff]
  %v292 = vld [vmem:[%s0 + $0x298] sm:$0xff]
  %v293 = vld [vmem:[%s0 + $0x2a0] sm:$0xff]
  %v294 = vld [vmem:[%s0 + $0x2a8] sm:$0xff]
  %v295 = vld [vmem:[%s0 + $0x2b0] sm:$0xff]
  %v296 = vld [vmem:[%s0 + $0x2b8] sm:$0xff]
  %v297 = vld [vmem:[%s0 + $0x2c0] sm:$0xff]
  %v298 = vld [vmem:[%s0 + $0x2c8] sm:$0xff]
  %v299 = vld [vmem:[%s0 + $0x2d0] sm:$0xff]
  %v300 = vld [vmem:[%s0 + $0x2d8] sm:$0xff]
  %v301 = vld [vmem:[%s0 + $0x2e0] sm:$0xff]
  %v302 = vld [vmem:[%s0 + $0x2e8] sm:$0xff]
  %v303 = vld [vmem:[%s0 + $0x2f0] sm:$0xff]
  %v304 = vld [vmem:[%s0 + $0x2f8] sm:$0xff]
  %v305 = vld [vmem:[%s0 + $0x300] sm:$0xff]
  %v306 = vld [vmem:[%s0 + $0x308] sm:$0xff]
  %v307 = vld [vmem:[%s0 + $0x310] sm:$0xff]
  %v308 = vld [vmem:[%s0 + $0x318] sm:$0xff]
  %v309 = vld [vmem:[%s0 + $0x320] sm:$0xff]
  %v310 = vld [vmem:[%s0 + $0x328] sm:$0xff]
  %v311 = vld [vmem:[%s0 + $0x330] sm:$0xff]
  %v312 = vld [vmem:[%s0 + $0x338] sm:$0xff]
  %v313 = vld [vmem:[%s0 + $0x340] sm:$0xff]
  %v314 = vld [vmem:[%s0 + $0x348] sm:$0xff]
  %v315 = vld [vmem:[%s0 + $0x350] sm:$0xff]
  %v316 = vld [vmem:[%s0 + $0x358] sm:$0xff]
  %v317 = vld [vmem:[%s0 + $0x360] sm:$0xff]
  %v318 = vld [vmem:[%s0 + $0x368] sm:$0xff]
  %v319 = vld [vmem:[%s0 + $0x370] sm:$0xff]
  %v320 = vld [vmem:[%s0 + $0x378] sm:$0xff]
  %v321 = vld [vmem:[%s0 + $0x380] sm:$0xff]
  %v322 = vld [vmem:[%s0 + $0x388] sm:$0xff]
  %v323 = vld [vmem:[%s0 + $0x390] sm:$0xff]
  %v324 = vld [vmem:[%s0 + $0x398] sm:$0xff]
  %v325 = vld [vmem:[%s0 + $0x3a0] sm:$0xff]
  %v326 = vld [vmem:[%s0 + $0x3a8] sm:$0xff]
  %v327 = vld [vmem:[%s0 + $0x3b0] sm:$0xff]
  %v328 = vld [vmem:[%s0 + $0x3b8] sm:$0xff]
  %v329 = vld [vmem:[%s0 + $0x3c0] sm:$0xff]
  %v330 = vld [vmem:[%s0 + $0x3c8] sm:$0xff]
  %v331 = vld [vmem:[%s0 + $0x3d0] sm:$0xff]
  %v332 = vld [vmem:[%s0 + $0x3d8] sm:$0xff]
  %v333 = vld [vmem:[%s0 + $0x3e0] sm:$0xff]
  %v334 = vld [vmem:[%s0 + $0x3e8] sm:$0xff]
  %v335 = vld [vmem:[%s0 + $0x3f0] sm:$0xff]
  %v336 = vld [vmem:[%s0 + $0x3f8] sm:$0xff]
  %v337 = vunpack.c.l.bf16 %v209
  %v338 = vunpack.c.h.bf16 %v209
  %v339 = vunpack.c.l.bf16 %v210
  %v340 = vunpack.c.h.bf16 %v210
  %v341 = vunpack.c.l.bf16 %v211
  %v342 = vunpack.c.h.bf16 %v211
  %v343 = vunpack.c.l.bf16 %v212
  %v344 = vunpack.c.h.bf16 %v212
  %v345 = vunpack.c.l.bf16 %v213
  %v346 = vunpack.c.h.bf16 %v213
  %v347 = vunpack.c.l.bf16 %v214
  %v348 = vunpack.c.h.bf16 %v214
  %v349 = vunpack.c.l.bf16 %v215
  %v350 = vunpack.c.h.bf16 %v215
  %v351 = vunpack.c.l.bf16 %v216
  %v352 = vunpack.c.h.bf16 %v216
  %v353 = vunpack.c.l.bf16 %v217
  %v354 = vunpack.c.h.bf16 %v217
  %v355 = vunpack.c.l.bf16 %v218
  %v356 = vunpack.c.h.bf16 %v218
  %v357 = vunpack.c.l.bf16 %v219
  %v358 = vunpack.c.h.bf16 %v219
  %v359 = vunpack.c.l.bf16 %v220
  %v360 = vunpack.c.h.bf16 %v220
  %v361 = vunpack.c.l.bf16 %v221
  %v362 = vunpack.c.h.bf16 %v221
  %v363 = vunpack.c.l.bf16 %v222
  %v364 = vunpack.c.h.bf16 %v222
  %v365 = vunpack.c.l.bf16 %v223
  %v366 = vunpack.c.h.bf16 %v223
  %v367 = vunpack.c.l.bf16 %v224
  %v368 = vunpack.c.h.bf16 %v224
  %v369 = vunpack.c.l.bf16 %v225
  %v370 = vunpack.c.h.bf16 %v225
  %v371 = vunpack.c.l.bf16 %v226
  %v372 = vunpack.c.h.bf16 %v226
  %v373 = vunpack.c.l.bf16 %v227
  %v374 = vunpack.c.h.bf16 %v227
  %v375 = vunpack.c.l.bf16 %v228
  %v376 = vunpack.c.h.bf16 %v228
  %v377 = vunpack.c.l.bf16 %v229
  %v378 = vunpack.c.h.bf16 %v229
  %v379 = vunpack.c.l.bf16 %v230
  %v380 = vunpack.c.h.bf16 %v230
  %v381 = vunpack.c.l.bf16 %v231
  %v382 = vunpack.c.h.bf16 %v231
  %v383 = vunpack.c.l.bf16 %v232
  %v384 = vunpack.c.h.bf16 %v232
  %v385 = vunpack.c.l.bf16 %v233
  %v386 = vunpack.c.h.bf16 %v233
  %v387 = vunpack.c.l.bf16 %v234
  %v388 = vunpack.c.h.bf16 %v234
  %v389 = vunpack.c.l.bf16 %v235
  %v390 = vunpack.c.h.bf16 %v235
  %v391 = vunpack.c.l.bf16 %v236
  %v392 = vunpack.c.h.bf16 %v236
  %v393 = vunpack.c.l.bf16 %v237
  %v394 = vunpack.c.h.bf16 %v237
  %v395 = vunpack.c.l.bf16 %v238
  %v396 = vunpack.c.h.bf16 %v238
  %v397 = vunpack.c.l.bf16 %v239
  %v398 = vunpack.c.h.bf16 %v239
  %v399 = vunpack.c.l.bf16 %v240
  %v400 = vunpack.c.h.bf16 %v240
  %v401 = vunpack.c.l.bf16 %v241
  %v402 = vunpack.c.h.bf16 %v241
  %v403 = vunpack.c.l.bf16 %v242
  %v404 = vunpack.c.h.bf16 %v242
  %v405 = vunpack.c.l.bf16 %v243
  %v406 = vunpack.c.h.bf16 %v243
  %v407 = vunpack.c.l.bf16 %v244
  %v408 = vunpack.c.h.bf16 %v244
  %v409 = vunpack.c.l.bf16 %v245
  %v410 = vunpack.c.h.bf16 %v245
  %v411 = vunpack.c.l.bf16 %v246
  %v412 = vunpack.c.h.bf16 %v246
  %v413 = vunpack.c.l.bf16 %v247
  %v414 = vunpack.c.h.bf16 %v247
  %v415 = vunpack.c.l.bf16 %v248
  %v416 = vunpack.c.h.bf16 %v248
  %v417 = vunpack.c.l.bf16 %v249
  %v418 = vunpack.c.h.bf16 %v249
  %v419 = vunpack.c.l.bf16 %v250
  %v420 = vunpack.c.h.bf16 %v250
  %v421 = vunpack.c.l.bf16 %v251
  %v422 = vunpack.c.h.bf16 %v251
  %v423 = vunpack.c.l.bf16 %v252
  %v424 = vunpack.c.h.bf16 %v252
  %v425 = vunpack.c.l.bf16 %v253
  %v426 = vunpack.c.h.bf16 %v253
  %v427 = vunpack.c.l.bf16 %v254
  %v428 = vunpack.c.h.bf16 %v254
  %v429 = vunpack.c.l.bf16 %v255
  %v430 = vunpack.c.h.bf16 %v255
  %v431 = vunpack.c.l.bf16 %v256
  %v432 = vunpack.c.h.bf16 %v256
  %v433 = vunpack.c.l.bf16 %v257
  %v434 = vunpack.c.h.bf16 %v257
  %v435 = vunpack.c.l.bf16 %v258
  %v436 = vunpack.c.h.bf16 %v258
  %v437 = vunpack.c.l.bf16 %v259
  %v438 = vunpack.c.h.bf16 %v259
  %v439 = vunpack.c.l.bf16 %v260
  %v440 = vunpack.c.h.bf16 %v260
  %v441 = vunpack.c.l.bf16 %v261
  %v442 = vunpack.c.h.bf16 %v261
  %v443 = vunpack.c.l.bf16 %v262
  %v444 = vunpack.c.h.bf16 %v262
  %v445 = vunpack.c.l.bf16 %v263
  %v446 = vunpack.c.h.bf16 %v263
  %v447 = vunpack.c.l.bf16 %v264
  %v448 = vunpack.c.h.bf16 %v264
  %v449 = vunpack.c.l.bf16 %v265
  %v450 = vunpack.c.h.bf16 %v265
  %v451 = vunpack.c.l.bf16 %v266
  %v452 = vunpack.c.h.bf16 %v266
  %v453 = vunpack.c.l.bf16 %v267
  %v454 = vunpack.c.h.bf16 %v267
  %v455 = vunpack.c.l.bf16 %v268
  %v456 = vunpack.c.h.bf16 %v268
  %v457 = vunpack.c.l.bf16 %v269
  %v458 = vunpack.c.h.bf16 %v269
  %v459 = vunpack.c.l.bf16 %v270
  %v460 = vunpack.c.h.bf16 %v270
  %v461 = vunpack.c.l.bf16 %v271
  %v462 = vunpack.c.h.bf16 %v271
  %v463 = vunpack.c.l.bf16 %v272
  %v464 = vunpack.c.h.bf16 %v272
  %v465 = vunpack.c.l.bf16 %v273
  %v466 = vunpack.c.h.bf16 %v273
  %v467 = vunpack.c.l.bf16 %v274
  %v468 = vunpack.c.h.bf16 %v274
  %v469 = vunpack.c.l.bf16 %v275
  %v470 = vunpack.c.h.bf16 %v275
  %v471 = vunpack.c.l.bf16 %v276
  %v472 = vunpack.c.h.bf16 %v276
  %v473 = vunpack.c.l.bf16 %v277
  %v474 = vunpack.c.h.bf16 %v277
  %v475 = vunpack.c.l.bf16 %v278
  %v476 = vunpack.c.h.bf16 %v278
  %v477 = vunpack.c.l.bf16 %v279
  %v478 = vunpack.c.h.bf16 %v279
  %v479 = vunpack.c.l.bf16 %v280
  %v480 = vunpack.c.h.bf16 %v280
  %v481 = vunpack.c.l.bf16 %v281
  %v482 = vunpack.c.h.bf16 %v281
  %v483 = vunpack.c.l.bf16 %v282
  %v484 = vunpack.c.h.bf16 %v282
  %v485 = vunpack.c.l.bf16 %v283
  %v486 = vunpack.c.h.bf16 %v283
  %v487 = vunpack.c.l.bf16 %v284
  %v488 = vunpack.c.h.bf16 %v284
  %v489 = vunpack.c.l.bf16 %v285
  %v490 = vunpack.c.h.bf16 %v285
  %v491 = vunpack.c.l.bf16 %v286
  %v492 = vunpack.c.h.bf16 %v286
  %v493 = vunpack.c.l.bf16 %v287
  %v494 = vunpack.c.h.bf16 %v287
  %v495 = vunpack.c.l.bf16 %v288
  %v496 = vunpack.c.h.bf16 %v288
  %v497 = vunpack.c.l.bf16 %v289
  %v498 = vunpack.c.h.bf16 %v289
  %v499 = vunpack.c.l.bf16 %v290
  %v500 = vunpack.c.h.bf16 %v290
  %v501 = vunpack.c.l.bf16 %v291
  %v502 = vunpack.c.h.bf16 %v291
  %v503 = vunpack.c.l.bf16 %v292
  %v504 = vunpack.c.h.bf16 %v292
  %v505 = vunpack.c.l.bf16 %v293
  %v506 = vunpack.c.h.bf16 %v293
  %v507 = vunpack.c.l.bf16 %v294
  %v508 = vunpack.c.h.bf16 %v294
  %v509 = vunpack.c.l.bf16 %v295
  %v510 = vunpack.c.h.bf16 %v295
  %v511 = vunpack.c.l.bf16 %v296
  %v512 = vunpack.c.h.bf16 %v296
  %v513 = vunpack.c.l.bf16 %v297
  %v514 = vunpack.c.h.bf16 %v297
  %v515 = vunpack.c.l.bf16 %v298
  %v516 = vunpack.c.h.bf16 %v298
  %v517 = vunpack.c.l.bf16 %v299
  %v518 = vunpack.c.h.bf16 %v299
  %v519 = vunpack.c.l.bf16 %v300
  %v520 = vunpack.c.h.bf16 %v300
  %v521 = vunpack.c.l.bf16 %v301
  %v522 = vunpack.c.h.bf16 %v301
  %v523 = vunpack.c.l.bf16 %v302
  %v524 = vunpack.c.h.bf16 %v302
  %v525 = vunpack.c.l.bf16 %v303
  %v526 = vunpack.c.h.bf16 %v303
  %v527 = vunpack.c.l.bf16 %v304
  %v528 = vunpack.c.h.bf16 %v304
  %v529 = vunpack.c.l.bf16 %v305
  %v530 = vunpack.c.h.bf16 %v305
  %v531 = vunpack.c.l.bf16 %v306
  %v532 = vunpack.c.h.bf16 %v306
  %v533 = vunpack.c.l.bf16 %v307
  %v534 = vunpack.c.h.bf16 %v307
  %v535 = vunpack.c.l.bf16 %v308
  %v536 = vunpack.c.h.bf16 %v308
  %v537 = vunpack.c.l.bf16 %v309
  %v538 = vunpack.c.h.bf16 %v309
  %v539 = vunpack.c.l.bf16 %v310
  %v540 = vunpack.c.h.bf16 %v310
  %v541 = vunpack.c.l.bf16 %v311
  %v542 = vunpack.c.h.bf16 %v311
  %v543 = vunpack.c.l.bf16 %v312
  %v544 = vunpack.c.h.bf16 %v312
  %v545 = vunpack.c.l.bf16 %v313
  %v546 = vunpack.c.h.bf16 %v313
  %v547 = vunpack.c.l.bf16 %v314
  %v548 = vunpack.c.h.bf16 %v314
  %v549 = vunpack.c.l.bf16 %v315
  %v550 = vunpack.c.h.bf16 %v315
  %v551 = vunpack.c.l.bf16 %v316
  %v552 = vunpack.c.h.bf16 %v316
  %v553 = vunpack.c.l.bf16 %v317
  %v554 = vunpack.c.h.bf16 %v317
  %v555 = vunpack.c.l.bf16 %v318
  %v556 = vunpack.c.h.bf16 %v318
  %v557 = vunpack.c.l.bf16 %v319
  %v558 = vunpack.c.h.bf16 %v319
  %v559 = vunpack.c.l.bf16 %v320
  %v560 = vunpack.c.h.bf16 %v320
  %v561 = vunpack.c.l.bf16 %v321
  %v562 = vunpack.c.h.bf16 %v321
  %v563 = vunpack.c.l.bf16 %v322
  %v564 = vunpack.c.h.bf16 %v322
  %v565 = vunpack.c.l.bf16 %v323
  %v566 = vunpack.c.h.bf16 %v323
  %v567 = vunpack.c.l.bf16 %v324
  %v568 = vunpack.c.h.bf16 %v324
  %v569 = vunpack.c.l.bf16 %v325
  %v570 = vunpack.c.h.bf16 %v325
  %v571 = vunpack.c.l.bf16 %v326
  %v572 = vunpack.c.h.bf16 %v326
  %v573 = vunpack.c.l.bf16 %v327
  %v574 = vunpack.c.h.bf16 %v327
  %v575 = vunpack.c.l.bf16 %v328
  %v576 = vunpack.c.h.bf16 %v328
  %v577 = vunpack.c.l.bf16 %v329
  %v578 = vunpack.c.h.bf16 %v329
  %v579 = vunpack.c.l.bf16 %v330
  %v580 = vunpack.c.h.bf16 %v330
  %v581 = vunpack.c.l.bf16 %v331
  %v582 = vunpack.c.h.bf16 %v331
  %v583 = vunpack.c.l.bf16 %v332
  %v584 = vunpack.c.h.bf16 %v332
  %v585 = vunpack.c.l.bf16 %v333
  %v586 = vunpack.c.h.bf16 %v333
  %v587 = vunpack.c.l.bf16 %v334
  %v588 = vunpack.c.h.bf16 %v334
  %v589 = vunpack.c.l.bf16 %v335
  %v590 = vunpack.c.h.bf16 %v335
  %v591 = vunpack.c.l.bf16 %v336
  %v592 = vunpack.c.h.bf16 %v336
  %593 = vmatprep.subr.mxu0 0.0
  %594 = vmatpush1.msra.mxu0 %v81
  %595 = vmatprep.subr.mxu0 0.0
  %596 = vmatpush1.msra.mxu0 %v82
  %597 = vmatprep.subr.mxu0 0.0
  %598 = vmatpush1.msra.mxu0 %v83
  %599 = vmatprep.subr.mxu0 0.0
  %600 = vmatpush1.msra.mxu0 %v84
  %601 = vmatprep.subr.mxu0 0.0
  %602 = vmatpush1.msra.mxu0 %v85
  %603 = vmatprep.subr.mxu0 0.0
  %604 = vmatpush1.msra.mxu0 %v86
  %605 = vmatprep.subr.mxu0 0.0
  %606 = vmatpush1.msra.mxu0 %v87
  %607 = vmatprep.subr.mxu0 0.0
  %608 = vmatpush1.msra.mxu0 %v88
  %609 = vmatprep.subr.mxu0 0.0
  %610 = vmatpush1.msra.mxu0 %v89
  %611 = vmatprep.subr.mxu0 0.0
  %612 = vmatpush1.msra.mxu0 %v90
  %613 = vmatprep.subr.mxu0 0.0
  %614 = vmatpush1.msra.mxu0 %v91
  %615 = vmatprep.subr.mxu0 0.0
  %616 = vmatpush1.msra.mxu0 %v92
  %617 = vmatprep.subr.mxu0 0.0
  %618 = vmatpush1.msra.mxu0 %v93
  %619 = vmatprep.subr.mxu0 0.0
  %620 = vmatpush1.msra.mxu0 %v94
  %621 = vmatprep.subr.mxu0 0.0
  %622 = vmatpush1.msra.mxu0 %v95
  %623 = vmatprep.subr.mxu0 0.0
  %624 = vmatpush1.msra.mxu0 %v96
  %625 = vmatprep.subr.mxu0 0.0
  %626 = vmatpush1.msra.mxu0 %v97
  %627 = vmatprep.subr.mxu0 0.0
  %628 = vmatpush1.msra.mxu0 %v98
  %629 = vmatprep.subr.mxu0 0.0
  %630 = vmatpush1.msra.mxu0 %v99
  %631 = vmatprep.subr.mxu0 0.0
  %632 = vmatpush1.msra.mxu0 %v100
  %633 = vmatprep.subr.mxu0 0.0
  %634 = vmatpush1.msra.mxu0 %v101
  %635 = vmatprep.subr.mxu0 0.0
  %636 = vmatpush1.msra.mxu0 %v102
  %637 = vmatprep.subr.mxu0 0.0
  %638 = vmatpush1.msra.mxu0 %v103
  %639 = vmatprep.subr.mxu0 0.0
  %640 = vmatpush1.msra.mxu0 %v104
  %641 = vmatprep.subr.mxu0 0.0
  %642 = vmatpush1.msra.mxu0 %v105
  %643 = vmatprep.subr.mxu0 0.0
  %644 = vmatpush1.msra.mxu0 %v106
  %645 = vmatprep.subr.mxu0 0.0
  %646 = vmatpush1.msra.mxu0 %v107
  %647 = vmatprep.subr.mxu0 0.0
  %648 = vmatpush1.msra.mxu0 %v108
  %649 = vmatprep.subr.mxu0 0.0
  %650 = vmatpush1.msra.mxu0 %v109
  %651 = vmatprep.subr.mxu0 0.0
  %652 = vmatpush1.msra.mxu0 %v110
  %653 = vmatprep.subr.mxu0 0.0
  %654 = vmatpush1.msra.mxu0 %v111
  %655 = vmatprep.subr.mxu0 0.0
  %656 = vmatpush1.msra.mxu0 %v112
  %657 = vmatprep.mubr.f32.mxu0 %v338
  %658 = vmatmul.mubr.f32.gmra.mrb[0].mxu0 %v337
  %v659 = vpop.f32.mrb[0].mxu0
  %v660 = vadd.f32 0.0, %v659
  %v661 = vpop.f32.mrb[0].mxu0
  %662 = vmatprep.mubr.f32.mxu0 %v342
  %663 = vmatmul.mubr.f32.gmra.mrb[0].mxu0 %v341
  %v664 = vpop.f32.mrb[0].mxu0
  %v665 = vadd.f32 0.0, %v664
  %v666 = vpop.f32.mrb[0].mxu0
  %667 = vmatprep.mubr.f32.mxu0 %v346
  %668 = vmatmul.mubr.f32.gmra.mrb[0].mxu0 %v345
  %v669 = vpop.f32.mrb[0].mxu0
  %v670 = vadd.f32 0.0, %v669
  %v671 = vpop.f32.mrb[0].mxu0
  %672 = vmatprep.mubr.f32.mxu0 %v350
  %673 = vmatmul.mubr.f32.gmra.mrb[0].mxu0 %v349
  %v674 = vpop.f32.mrb[0].mxu0
  %v675 = vadd.f32 0.0, %v674
  %v676 = vpop.f32.mrb[0].mxu0
  %677 = vmatprep.mubr.f32.mxu0 %v354
  %678 = vmatmul.mubr.f32.gmra.mrb[0].mxu0 %v353
  %v679 = vpop.f32.mrb[0].mxu0
  %v680 = vadd.f32 0.0, %v679
  %v681 = vpop.f32.mrb[0].mxu0
  %682 = vmatprep.mubr.f32.mxu0 %v358
  %683 = vmatmul.mubr.f32.gmra.mrb[0].mxu0 %v357
  %v684 = vpop.f32.mrb[0].mxu0
  %v685 = vadd.f32 0.0, %v684
  %v686 = vpop.f32.mrb[0].mxu0
  %687 = vmatprep.mubr.f32.mxu0 %v362
  %688 = vmatmul.mubr.f32.gmra.mrb[0].mxu0 %v361
  %v689 = vpop.f32.mrb[0].mxu0
  %v690 = vadd.f32 0.0, %v689
  %v691 = vpop.f32.mrb[0].mxu0
  %692 = vmatprep.mubr.f32.mxu0 %v366
  %693 = vmatmul.mubr.f32.gmra.mrb[0].mxu0 %v365
  %v694 = vpop.f32.mrb[0].mxu0
  %v695 = vadd.f32 0.0, %v694
  %v696 = vpop.f32.mrb[0].mxu0
  %697 = vmatprep.mubr.f32.mxu0 %v370
  %698 = vmatmul.mubr.f32.gmra.mrb[0].mxu0 %v369
  %v699 = vpop.f32.mrb[0].mxu0
  %v700 = vadd.f32 0.0, %v699
  %v701 = vpop.f32.mrb[0].mxu0
  %702 = vmatprep.mubr.f32.mxu0 %v374
  %703 = vmatmul.mubr.f32.gmra.mrb[0].mxu0 %v373
  %v704 = vpop.f32.mrb[0].mxu0
  %v705 = vadd.f32 0.0, %v704
  %v706 = vpop.f32.mrb[0].mxu0
  %707 = vmatprep.mubr.f32.mxu0 %v378
  %708 = vmatmul.mubr.f32.gmra.mrb[0].mxu0 %v377
  %v709 = vpop.f32.mrb[0].mxu0
  %v710 = vadd.f32 0.0, %v709
  %v711 = vpop.f32.mrb[0].mxu0
  %712 = vmatprep.mubr.f32.mxu0 %v382
  %713 = vmatmul.mubr.f32.gmra.mrb[0].mxu0 %v381
  %v714 = vpop.f32.mrb[0].mxu0
  %v715 = vadd.f32 0.0, %v714
  %v716 = vpop.f32.mrb[0].mxu0
  %717 = vmatprep.mubr.f32.mxu0 %v386
  %718 = vmatmul.mubr.f32.gmra.mrb[0].mxu0 %v385
  %v719 = vpop.f32.mrb[0].mxu0
  %v720 = vadd.f32 0.0, %v719
  %v721 = vpop.f32.mrb[0].mxu0
  %722 = vmatprep.mubr.f32.mxu0 %v390
  %723 = vmatmul.mubr.f32.gmra.mrb[0].mxu0 %v389
  %v724 = vpop.f32.mrb[0].mxu0
  %v725 = vadd.f32 0.0, %v724
  %v726 = vpop.f32.mrb[0].mxu0
  %727 = vmatprep.mubr.f32.mxu0 %v394
  %728 = vmatmul.mubr.f32.gmra.mrb[0].mxu0 %v393
  %v729 = vpop.f32.mrb[0].mxu0
  %v730 = vadd.f32 0.0, %v729
  %v731 = vpop.f32.mrb[0].mxu0
  %732 = vmatprep.mubr.f32.mxu0 %v398
  %733 = vmatmul.mubr.f32.gmra.mrb[0].mxu0 %v397
  %v734 = vpop.f32.mrb[0].mxu0
  %v735 = vadd.f32 0.0, %v734
  %v736 = vpop.f32.mrb[0].mxu0
  %737 = vmatprep.mubr.f32.mxu0 %v402
  %738 = vmatmul.mubr.f32.gmra.mrb[0].mxu0 %v401
  %v739 = vpop.f32.mrb[0].mxu0
  %v740 = vadd.f32 0.0, %v739
  %v741 = vpop.f32.mrb[0].mxu0
  %742 = vmatprep.mubr.f32.mxu0 %v406
  %743 = vmatmul.mubr.f32.gmra.mrb[0].mxu0 %v405
  %v744 = vpop.f32.mrb[0].mxu0
  %v745 = vadd.f32 0.0, %v744
  %v746 = vpop.f32.mrb[0].mxu0
  %747 = vmatprep.mubr.f32.mxu0 %v410
  %748 = vmatmul.mubr.f32.gmra.mrb[0].mxu0 %v409
  %v749 = vpop.f32.mrb[0].mxu0
  %v750 = vadd.f32 0.0, %v749
  %v751 = vpop.f32.mrb[0].mxu0
  %752 = vmatprep.mubr.f32.mxu0 %v414
  %753 = vmatmul.mubr.f32.gmra.mrb[0].mxu0 %v413
  %v754 = vpop.f32.mrb[0].mxu0
  %v755 = vadd.f32 0.0, %v754
  %v756 = vpop.f32.mrb[0].mxu0
  %757 = vmatprep.mubr.f32.mxu0 %v418
  %758 = vmatmul.mubr.f32.gmra.mrb[0].mxu0 %v417
  %v759 = vpop.f32.mrb[0].mxu0
  %v760 = vadd.f32 0.0, %v759
  %v761 = vpop.f32.mrb[0].mxu0
  %762 = vmatprep.mubr.f32.mxu0 %v422
  %763 = vmatmul.mubr.f32.gmra.mrb[0].mxu0 %v421
  %v764 = vpop.f32.mrb[0].mxu0
  %v765 = vadd.f32 0.0, %v764
  %v766 = vpop.f32.mrb[0].mxu0
  %767 = vmatprep.mubr.f32.mxu0 %v426
  %768 = vmatmul.mubr.f32.gmra.mrb[0].mxu0 %v425
  %v769 = vpop.f32.mrb[0].mxu0
  %v770 = vadd.f32 0.0, %v769
  %v771 = vpop.f32.mrb[0].mxu0
  %772 = vmatprep.mubr.f32.mxu0 %v430
  %773 = vmatmul.mubr.f32.gmra.mrb[0].mxu0 %v429
  %v774 = vpop.f32.mrb[0].mxu0
  %v775 = vadd.f32 0.0, %v774
  %v776 = vpop.f32.mrb[0].mxu0
  %777 = vmatprep.mubr.f32.mxu0 %v434
  %778 = vmatmul.mubr.f32.gmra.mrb[0].mxu0 %v433
  %v779 = vpop.f32.mrb[0].mxu0
  %v780 = vadd.f32 0.0, %v779
  %v781 = vpop.f32.mrb[0].mxu0
  %782 = vmatprep.mubr.f32.mxu0 %v438
  %783 = vmatmul.mubr.f32.gmra.mrb[0].mxu0 %v437
  %v784 = vpop.f32.mrb[0].mxu0
  %v785 = vadd.f32 0.0, %v784
  %v786 = vpop.f32.mrb[0].mxu0
  %787 = vmatprep.mubr.f32.mxu0 %v442
  %788 = vmatmul.mubr.f32.gmra.mrb[0].mxu0 %v441
  %v789 = vpop.f32.mrb[0].mxu0
  %v790 = vadd.f32 0.0, %v789
  %v791 = vpop.f32.mrb[0].mxu0
  %792 = vmatprep.mubr.f32.mxu0 %v446
  %793 = vmatmul.mubr.f32.gmra.mrb[0].mxu0 %v445
  %v794 = vpop.f32.mrb[0].mxu0
  %v795 = vadd.f32 0.0, %v794
  %v796 = vpop.f32.mrb[0].mxu0
  %797 = vmatprep.mubr.f32.mxu0 %v450
  %798 = vmatmul.mubr.f32.gmra.mrb[0].mxu0 %v449
  %v799 = vpop.f32.mrb[0].mxu0
  %v800 = vadd.f32 0.0, %v799
  %v801 = vpop.f32.mrb[0].mxu0
  %802 = vmatprep.mubr.f32.mxu0 %v454
  %803 = vmatmul.mubr.f32.gmra.mrb[0].mxu0 %v453
  %v804 = vpop.f32.mrb[0].mxu0
  %v805 = vadd.f32 0.0, %v804
  %v806 = vpop.f32.mrb[0].mxu0
  %807 = vmatprep.mubr.f32.mxu0 %v458
  %808 = vmatmul.mubr.f32.gmra.mrb[0].mxu0 %v457
  %v809 = vpop.f32.mrb[0].mxu0
  %v810 = vadd.f32 0.0, %v809
  %v811 = vpop.f32.mrb[0].mxu0
  %812 = vmatprep.mubr.f32.mxu0 %v462
  %813 = vmatmul.mubr.f32.gmra.mrb[0].mxu0 %v461
  %v814 = vpop.f32.mrb[0].mxu0
  %v815 = vadd.f32 0.0, %v814
  %v816 = vpop.f32.mrb[0].mxu0
  %817 = vmatprep.mubr.f32.mxu0 %v466
  %818 = vmatmul.mubr.f32.gmra.mrb[0].mxu0 %v465
  %v819 = vpop.f32.mrb[0].mxu0
  %v820 = vadd.f32 0.0, %v819
  %v821 = vpop.f32.mrb[0].mxu0
  %822 = vmatprep.mubr.f32.mxu0 %v470
  %823 = vmatmul.mubr.f32.gmra.mrb[0].mxu0 %v469
  %v824 = vpop.f32.mrb[0].mxu0
  %v825 = vadd.f32 0.0, %v824
  %v826 = vpop.f32.mrb[0].mxu0
  %827 = vmatprep.mubr.f32.mxu0 %v474
  %828 = vmatmul.mubr.f32.gmra.mrb[0].mxu0 %v473
  %v829 = vpop.f32.mrb[0].mxu0
  %v830 = vadd.f32 0.0, %v829
  %v831 = vpop.f32.mrb[0].mxu0
  %832 = vmatprep.mubr.f32.mxu0 %v478
  %833 = vmatmul.mubr.f32.gmra.mrb[0].mxu0 %v477
  %v834 = vpop.f32.mrb[0].mxu0
  %v835 = vadd.f32 0.0, %v834
  %v836 = vpop.f32.mrb[0].mxu0
  %837 = vmatprep.mubr.f32.mxu0 %v482
  %838 = vmatmul.mubr.f32.gmra.mrb[0].mxu0 %v481
  %v839 = vpop.f32.mrb[0].mxu0
  %v840 = vadd.f32 0.0, %v839
  %v841 = vpop.f32.mrb[0].mxu0
  %842 = vmatprep.mubr.f32.mxu0 %v486
  %843 = vmatmul.mubr.f32.gmra.mrb[0].mxu0 %v485
  %v844 = vpop.f32.mrb[0].mxu0
  %v845 = vadd.f32 0.0, %v844
  %v846 = vpop.f32.mrb[0].mxu0
  %847 = vmatprep.mubr.f32.mxu0 %v490
  %848 = vmatmul.mubr.f32.gmra.mrb[0].mxu0 %v489
  %v849 = vpop.f32.mrb[0].mxu0
  %v850 = vadd.f32 0.0, %v849
  %v851 = vpop.f32.mrb[0].mxu0
  %852 = vmatprep.mubr.f32.mxu0 %v494
  %853 = vmatmul.mubr.f32.gmra.mrb[0].mxu0 %v493
  %v854 = vpop.f32.mrb[0].mxu0
  %v855 = vadd.f32 0.0, %v854
  %v856 = vpop.f32.mrb[0].mxu0
  %857 = vmatprep.mubr.f32.mxu0 %v498
  %858 = vmatmul.mubr.f32.gmra.mrb[0].mxu0 %v497
  %v859 = vpop.f32.mrb[0].mxu0
  %v860 = vadd.f32 0.0, %v859
  %v861 = vpop.f32.mrb[0].mxu0
  %862 = vmatprep.mubr.f32.mxu0 %v502
  %863 = vmatmul.mubr.f32.gmra.mrb[0].mxu0 %v501
  %v864 = vpop.f32.mrb[0].mxu0
  %v865 = vadd.f32 0.0, %v864
  %v866 = vpop.f32.mrb[0].mxu0
  %867 = vmatprep.mubr.f32.mxu0 %v506
  %868 = vmatmul.mubr.f32.gmra.mrb[0].mxu0 %v505
  %v869 = vpop.f32.mrb[0].mxu0
  %v870 = vadd.f32 0.0, %v869
  %v871 = vpop.f32.mrb[0].mxu0
  %872 = vmatprep.mubr.f32.mxu0 %v510
  %873 = vmatmul.mubr.f32.gmra.mrb[0].mxu0 %v509
  %v874 = vpop.f32.mrb[0].mxu0
  %v875 = vadd.f32 0.0, %v874
  %v876 = vpop.f32.mrb[0].mxu0
  %877 = vmatprep.mubr.f32.mxu0 %v514
  %878 = vmatmul.mubr.f32.gmra.mrb[0].mxu0 %v513
  %v879 = vpop.f32.mrb[0].mxu0
  %v880 = vadd.f32 0.0, %v879
  %v881 = vpop.f32.mrb[0].mxu0
  %882 = vmatprep.mubr.f32.mxu0 %v518
  %883 = vmatmul.mubr.f32.gmra.mrb[0].mxu0 %v517
  %v884 = vpop.f32.mrb[0].mxu0
  %v885 = vadd.f32 0.0, %v884
  %v886 = vpop.f32.mrb[0].mxu0
  %887 = vmatprep.mubr.f32.mxu0 %v522
  %888 = vmatmul.mubr.f32.gmra.mrb[0].mxu0 %v521
  %v889 = vpop.f32.mrb[0].mxu0
  %v890 = vadd.f32 0.0, %v889
  %v891 = vpop.f32.mrb[0].mxu0
  %892 = vmatprep.mubr.f32.mxu0 %v526
  %893 = vmatmul.mubr.f32.gmra.mrb[0].mxu0 %v525
  %v894 = vpop.f32.mrb[0].mxu0
  %v895 = vadd.f32 0.0, %v894
  %v896 = vpop.f32.mrb[0].mxu0
  %897 = vmatprep.mubr.f32.mxu0 %v530
  %898 = vmatmul.mubr.f32.gmra.mrb[0].mxu0 %v529
  %v899 = vpop.f32.mrb[0].mxu0
  %v900 = vadd.f32 0.0, %v899
  %v901 = vpop.f32.mrb[0].mxu0
  %902 = vmatprep.mubr.f32.mxu0 %v534
  %903 = vmatmul.mubr.f32.gmra.mrb[0].mxu0 %v533
  %v904 = vpop.f32.mrb[0].mxu0
  %v905 = vadd.f32 0.0, %v904
  %v906 = vpop.f32.mrb[0].mxu0
  %907 = vmatprep.mubr.f32.mxu0 %v538
  %908 = vmatmul.mubr.f32.gmra.mrb[0].mxu0 %v537
  %v909 = vpop.f32.mrb[0].mxu0
  %v910 = vadd.f32 0.0, %v909
  %v911 = vpop.f32.mrb[0].mxu0
  %912 = vmatprep.mubr.f32.mxu0 %v542
  %913 = vmatmul.mubr.f32.gmra.mrb[0].mxu0 %v541
  %v914 = vpop.f32.mrb[0].mxu0
  %v915 = vadd.f32 0.0, %v914
  %v916 = vpop.f32.mrb[0].mxu0
  %917 = vmatprep.mubr.f32.mxu0 %v546
  %918 = vmatmul.mubr.f32.gmra.mrb[0].mxu0 %v545
  %v919 = vpop.f32.mrb[0].mxu0
  %v920 = vadd.f32 0.0, %v919
  %v921 = vpop.f32.mrb[0].mxu0
  %922 = vmatprep.mubr.f32.mxu0 %v550
  %923 = vmatmul.mubr.f32.gmra.mrb[0].mxu0 %v549
  %v924 = vpop.f32.mrb[0].mxu0
  %v925 = vadd.f32 0.0, %v924
  %v926 = vpop.f32.mrb[0].mxu0
  %927 = vmatprep.mubr.f32.mxu0 %v554
  %928 = vmatmul.mubr.f32.gmra.mrb[0].mxu0 %v553
  %v929 = vpop.f32.mrb[0].mxu0
  %v930 = vadd.f32 0.0, %v929
  %v931 = vpop.f32.mrb[0].mxu0
  %932 = vmatprep.mubr.f32.mxu0 %v558
  %933 = vmatmul.mubr.f32.gmra.mrb[0].mxu0 %v557
  %v934 = vpop.f32.mrb[0].mxu0
  %v935 = vadd.f32 0.0, %v934
  %v936 = vpop.f32.mrb[0].mxu0
  %937 = vmatprep.mubr.f32.mxu0 %v562
  %938 = vmatmul.mubr.f32.gmra.mrb[0].mxu0 %v561
  %v939 = vpop.f32.mrb[0].mxu0
  %v940 = vadd.f32 0.0, %v939
  %v941 = vpop.f32.mrb[0].mxu0
  %942 = vmatprep.mubr.f32.mxu0 %v566
  %943 = vmatmul.mubr.f32.gmra.mrb[0].mxu0 %v565
  %v944 = vpop.f32.mrb[0].mxu0
  %v945 = vadd.f32 0.0, %v944
  %v946 = vpop.f32.mrb[0].mxu0
  %947 = vmatprep.mubr.f32.mxu0 %v570
  %948 = vmatmul.mubr.f32.gmra.mrb[0].mxu0 %v569
  %v949 = vpop.f32.mrb[0].mxu0
  %v950 = vadd.f32 0.0, %v949
  %v951 = vpop.f32.mrb[0].mxu0
  %952 = vmatprep.mubr.f32.mxu0 %v574
  %953 = vmatmul.mubr.f32.gmra.mrb[0].mxu0 %v573
  %v954 = vpop.f32.mrb[0].mxu0
  %v955 = vadd.f32 0.0, %v954
  %v956 = vpop.f32.mrb[0].mxu0
  %957 = vmatprep.mubr.f32.mxu0 %v578
  %958 = vmatmul.mubr.f32.gmra.mrb[0].mxu0 %v577
  %v959 = vpop.f32.mrb[0].mxu0
  %v960 = vadd.f32 0.0, %v959
  %v961 = vpop.f32.mrb[0].mxu0
  %962 = vmatprep.mubr.f32.mxu0 %v582
  %963 = vmatmul.mubr.f32.gmra.mrb[0].mxu0 %v581
  %v964 = vpop.f32.mrb[0].mxu0
  %v965 = vadd.f32 0.0, %v964
  %v966 = vpop.f32.mrb[0].mxu0
  %967 = vmatprep.mubr.f32.mxu0 %v586
  %968 = vmatmul.mubr.f32.gmra.mrb[0].mxu0 %v585
  %v969 = vpop.f32.mrb[0].mxu0
  %v970 = vadd.f32 0.0, %v969
  %v971 = vpop.f32.mrb[0].mxu0
  %972 = vmatprep.mubr.f32.mxu0 %v590
  %973 = vmatmul.mubr.f32.gmra.mrb[0].mxu0 %v589
  %v974 = vpop.f32.mrb[0].mxu0
  %v975 = vadd.f32 0.0, %v974
  %v976 = vpop.f32.mrb[0].mxu0
  %977 = vdwg.mxu0
  %978 = vmatprep.subr.mxu0 0.0
  %979 = vmatpush1.msra.mxu0 %v113
  %980 = vmatprep.subr.mxu0 0.0
  %981 = vmatpush1.msra.mxu0 %v114
  %982 = vmatprep.subr.mxu0 0.0
  %983 = vmatpush1.msra.mxu0 %v115
  %984 = vmatprep.subr.mxu0 0.0
  %985 = vmatpush1.msra.mxu0 %v116
  %986 = vmatprep.subr.mxu0 0.0
  %987 = vmatpush1.msra.mxu0 %v117
  %988 = vmatprep.subr.mxu0 0.0
  %989 = vmatpush1.msra.mxu0 %v118
  %990 = vmatprep.subr.mxu0 0.0
  %991 = vmatpush1.msra.mxu0 %v119
  %992 = vmatprep.subr.mxu0 0.0
  %993 = vmatpush1.msra.mxu0 %v120
  %994 = vmatprep.subr.mxu0 0.0
  %995 = vmatpush1.msra.mxu0 %v121
  %996 = vmatprep.subr.mxu0 0.0
  %997 = vmatpush1.msra.mxu0 %v122
  %998 = vmatprep.subr.mxu0 0.0
  %999 = vmatpush1.msra.mxu0 %v123
  %1000 = vmatprep.subr.mxu0 0.0
  %1001 = vmatpush1.msra.mxu0 %v124
  %1002 = vmatprep.subr.mxu0 0.0
  %1003 = vmatpush1.msra.mxu0 %v125
  %1004 = vmatprep.subr.mxu0 0.0
  %1005 = vmatpush1.msra.mxu0 %v126
  %1006 = vmatprep.subr.mxu0 0.0
  %1007 = vmatpush1.msra.mxu0 %v127
  %1008 = vmatprep.subr.mxu0 0.0
  %1009 = vmatpush1.msra.mxu0 %v128
  %1010 = vmatprep.subr.mxu0 0.0
  %1011 = vmatpush1.msra.mxu0 %v129
  %1012 = vmatprep.subr.mxu0 0.0
  %1013 = vmatpush1.msra.mxu0 %v130
  %1014 = vmatprep.subr.mxu0 0.0
  %1015 = vmatpush1.msra.mxu0 %v131
  %1016 = vmatprep.subr.mxu0 0.0
  %1017 = vmatpush1.msra.mxu0 %v132
  %1018 = vmatprep.subr.mxu0 0.0
  %1019 = vmatpush1.msra.mxu0 %v133
  %1020 = vmatprep.subr.mxu0 0.0
  %1021 = vmatpush1.msra.mxu0 %v134
  %1022 = vmatprep.subr.mxu0 0.0
  %1023 = vmatpush1.msra.mxu0 %v135
  %1024 = vmatprep.subr.mxu0 0.0
  %1025 = vmatpush1.msra.mxu0 %v136
  %1026 = vmatprep.subr.mxu0 0.0
  %1027 = vmatpush1.msra.mxu0 %v137
  %1028 = vmatprep.subr.mxu0 0.0
  %1029 = vmatpush1.msra.mxu0 %v138
  %1030 = vmatprep.subr.mxu0 0.0
  %1031 = vmatpush1.msra.mxu0 %v139
  %1032 = vmatprep.subr.mxu0 0.0
  %1033 = vmatpush1.msra.mxu0 %v140
  %1034 = vmatprep.subr.mxu0 0.0
  %1035 = vmatpush1.msra.mxu0 %v141
  %1036 = vmatprep.subr.mxu0 0.0
  %1037 = vmatpush1.msra.mxu0 %v142
  %1038 = vmatprep.subr.mxu0 0.0
  %1039 = vmatpush1.msra.mxu0 %v143
  %1040 = vmatprep.subr.mxu0 0.0
  %1041 = vmatpush1.msra.mxu0 %v144
  %1042 = vmatprep.mubr.f32.mxu0 %v340
  %1043 = vmatmul.mubr.f32.gmra.mrb[0].mxu0 %v339
  %v1044 = vpop.f32.mrb[0].mxu0
  %v1045 = vadd.f32 %v660, %v1044
  %v1046 = vpop.f32.mrb[0].mxu0
  %1047 = vmatprep.mubr.f32.mxu0 %v344
  %1048 = vmatmul.mubr.f32.gmra.mrb[0].mxu0 %v343
  %v1049 = vpop.f32.mrb[0].mxu0
  %v1050 = vadd.f32 %v665, %v1049
  %v1051 = vpop.f32.mrb[0].mxu0
  %1052 = vmatprep.mubr.f32.mxu0 %v348
  %1053 = vmatmul.mubr.f32.gmra.mrb[0].mxu0 %v347
  %v1054 = vpop.f32.mrb[0].mxu0
  %v1055 = vadd.f32 %v670, %v1054
  %v1056 = vpop.f32.mrb[0].mxu0
  %1057 = vmatprep.mubr.f32.mxu0 %v352
  %1058 = vmatmul.mubr.f32.gmra.mrb[0].mxu0 %v351
  %v1059 = vpop.f32.mrb[0].mxu0
  %v1060 = vadd.f32 %v675, %v1059
  %v1061 = vpop.f32.mrb[0].mxu0
  %1062 = vmatprep.mubr.f32.mxu0 %v356
  %1063 = vmatmul.mubr.f32.gmra.mrb[0].mxu0 %v355
  %v1064 = vpop.f32.mrb[0].mxu0
  %v1065 = vadd.f32 %v680, %v1064
  %v1066 = vpop.f32.mrb[0].mxu0
  %1067 = vmatprep.mubr.f32.mxu0 %v360
  %1068 = vmatmul.mubr.f32.gmra.mrb[0].mxu0 %v359
  %v1069 = vpop.f32.mrb[0].mxu0
  %v1070 = vadd.f32 %v685, %v1069
  %v1071 = vpop.f32.mrb[0].mxu0
  %1072 = vmatprep.mubr.f32.mxu0 %v364
  %1073 = vmatmul.mubr.f32.gmra.mrb[0].mxu0 %v363
  %v1074 = vpop.f32.mrb[0].mxu0
  %v1075 = vadd.f32 %v690, %v1074
  %v1076 = vpop.f32.mrb[0].mxu0
  %1077 = vmatprep.mubr.f32.mxu0 %v368
  %1078 = vmatmul.mubr.f32.gmra.mrb[0].mxu0 %v367
  %v1079 = vpop.f32.mrb[0].mxu0
  %v1080 = vadd.f32 %v695, %v1079
  %v1081 = vpop.f32.mrb[0].mxu0
  %1082 = vmatprep.mubr.f32.mxu0 %v372
  %1083 = vmatmul.mubr.f32.gmra.mrb[0].mxu0 %v371
  %v1084 = vpop.f32.mrb[0].mxu0
  %v1085 = vadd.f32 %v700, %v1084
  %v1086 = vpop.f32.mrb[0].mxu0
  %1087 = vmatprep.mubr.f32.mxu0 %v376
  %1088 = vmatmul.mubr.f32.gmra.mrb[0].mxu0 %v375
  %v1089 = vpop.f32.mrb[0].mxu0
  %v1090 = vadd.f32 %v705, %v1089
  %v1091 = vpop.f32.mrb[0].mxu0
  %1092 = vmatprep.mubr.f32.mxu0 %v380
  %1093 = vmatmul.mubr.f32.gmra.mrb[0].mxu0 %v379
  %v1094 = vpop.f32.mrb[0].mxu0
  %v1095 = vadd.f32 %v710, %v1094
  %v1096 = vpop.f32.mrb[0].mxu0
  %1097 = vmatprep.mubr.f32.mxu0 %v384
  %1098 = vmatmul.mubr.f32.gmra.mrb[0].mxu0 %v383
  %v1099 = vpop.f32.mrb[0].mxu0
  %v1100 = vadd.f32 %v715, %v1099
  %v1101 = vpop.f32.mrb[0].mxu0
  %1102 = vmatprep.mubr.f32.mxu0 %v388
  %1103 = vmatmul.mubr.f32.gmra.mrb[0].mxu0 %v387
  %v1104 = vpop.f32.mrb[0].mxu0
  %v1105 = vadd.f32 %v720, %v1104
  %v1106 = vpop.f32.mrb[0].mxu0
  %1107 = vmatprep.mubr.f32.mxu0 %v392
  %1108 = vmatmul.mubr.f32.gmra.mrb[0].mxu0 %v391
  %v1109 = vpop.f32.mrb[0].mxu0
  %v1110 = vadd.f32 %v725, %v1109
  %v1111 = vpop.f32.mrb[0].mxu0
  %1112 = vmatprep.mubr.f32.mxu0 %v396
  %1113 = vmatmul.mubr.f32.gmra.mrb[0].mxu0 %v395
  %v1114 = vpop.f32.mrb[0].mxu0
  %v1115 = vadd.f32 %v730, %v1114
  %v1116 = vpop.f32.mrb[0].mxu0
  %1117 = vmatprep.mubr.f32.mxu0 %v400
  %1118 = vmatmul.mubr.f32.gmra.mrb[0].mxu0 %v399
  %v1119 = vpop.f32.mrb[0].mxu0
  %v1120 = vadd.f32 %v735, %v1119
  %v1121 = vpop.f32.mrb[0].mxu0
  %1122 = vmatprep.mubr.f32.mxu0 %v404
  %1123 = vmatmul.mubr.f32.gmra.mrb[0].mxu0 %v403
  %v1124 = vpop.f32.mrb[0].mxu0
  %v1125 = vadd.f32 %v740, %v1124
  %v1126 = vpop.f32.mrb[0].mxu0
  %1127 = vmatprep.mubr.f32.mxu0 %v408
  %1128 = vmatmul.mubr.f32.gmra.mrb[0].mxu0 %v407
  %v1129 = vpop.f32.mrb[0].mxu0
  %v1130 = vadd.f32 %v745, %v1129
  %v1131 = vpop.f32.mrb[0].mxu0
  %1132 = vmatprep.mubr.f32.mxu0 %v412
  %1133 = vmatmul.mubr.f32.gmra.mrb[0].mxu0 %v411
  %v1134 = vpop.f32.mrb[0].mxu0
  %v1135 = vadd.f32 %v750, %v1134
  %v1136 = vpop.f32.mrb[0].mxu0
  %1137 = vmatprep.mubr.f32.mxu0 %v416
  %1138 = vmatmul.mubr.f32.gmra.mrb[0].mxu0 %v415
  %v1139 = vpop.f32.mrb[0].mxu0
  %v1140 = vadd.f32 %v755, %v1139
  %v1141 = vpop.f32.mrb[0].mxu0
  %1142 = vmatprep.mubr.f32.mxu0 %v420
  %1143 = vmatmul.mubr.f32.gmra.mrb[0].mxu0 %v419
  %v1144 = vpop.f32.mrb[0].mxu0
  %v1145 = vadd.f32 %v760, %v1144
  %v1146 = vpop.f32.mrb[0].mxu0
  %1147 = vmatprep.mubr.f32.mxu0 %v424
  %1148 = vmatmul.mubr.f32.gmra.mrb[0].mxu0 %v423
  %v1149 = vpop.f32.mrb[0].mxu0
  %v1150 = vadd.f32 %v765, %v1149
  %v1151 = vpop.f32.mrb[0].mxu0
  %1152 = vmatprep.mubr.f32.mxu0 %v428
  %1153 = vmatmul.mubr.f32.gmra.mrb[0].mxu0 %v427
  %v1154 = vpop.f32.mrb[0].mxu0
  %v1155 = vadd.f32 %v770, %v1154
  %v1156 = vpop.f32.mrb[0].mxu0
  %1157 = vmatprep.mubr.f32.mxu0 %v432
  %1158 = vmatmul.mubr.f32.gmra.mrb[0].mxu0 %v431
  %v1159 = vpop.f32.mrb[0].mxu0
  %v1160 = vadd.f32 %v775, %v1159
  %v1161 = vpop.f32.mrb[0].mxu0
  %1162 = vmatprep.mubr.f32.mxu0 %v436
  %1163 = vmatmul.mubr.f32.gmra.mrb[0].mxu0 %v435
  %v1164 = vpop.f32.mrb[0].mxu0
  %v1165 = vadd.f32 %v780, %v1164
  %v1166 = vpop.f32.mrb[0].mxu0
  %1167 = vmatprep.mubr.f32.mxu0 %v440
  %1168 = vmatmul.mubr.f32.gmra.mrb[0].mxu0 %v439
  %v1169 = vpop.f32.mrb[0].mxu0
  %v1170 = vadd.f32 %v785, %v1169
  %v1171 = vpop.f32.mrb[0].mxu0
  %1172 = vmatprep.mubr.f32.mxu0 %v444
  %1173 = vmatmul.mubr.f32.gmra.mrb[0].mxu0 %v443
  %v1174 = vpop.f32.mrb[0].mxu0
  %v1175 = vadd.f32 %v790, %v1174
  %v1176 = vpop.f32.mrb[0].mxu0
  %1177 = vmatprep.mubr.f32.mxu0 %v448
  %1178 = vmatmul.mubr.f32.gmra.mrb[0].mxu0 %v447
  %v1179 = vpop.f32.mrb[0].mxu0
  %v1180 = vadd.f32 %v795, %v1179
  %v1181 = vpop.f32.mrb[0].mxu0
  %1182 = vmatprep.mubr.f32.mxu0 %v452
  %1183 = vmatmul.mubr.f32.gmra.mrb[0].mxu0 %v451
  %v1184 = vpop.f32.mrb[0].mxu0
  %v1185 = vadd.f32 %v800, %v1184
  %v1186 = vpop.f32.mrb[0].mxu0
  %1187 = vmatprep.mubr.f32.mxu0 %v456
  %1188 = vmatmul.mubr.f32.gmra.mrb[0].mxu0 %v455
  %v1189 = vpop.f32.mrb[0].mxu0
  %v1190 = vadd.f32 %v805, %v1189
  %v1191 = vpop.f32.mrb[0].mxu0
  %1192 = vmatprep.mubr.f32.mxu0 %v460
  %1193 = vmatmul.mubr.f32.gmra.mrb[0].mxu0 %v459
  %v1194 = vpop.f32.mrb[0].mxu0
  %v1195 = vadd.f32 %v810, %v1194
  %v1196 = vpop.f32.mrb[0].mxu0
  %1197 = vmatprep.mubr.f32.mxu0 %v464
  %1198 = vmatmul.mubr.f32.gmra.mrb[0].mxu0 %v463
  %v1199 = vpop.f32.mrb[0].mxu0
  %v1200 = vadd.f32 %v815, %v1199
  %v1201 = vpop.f32.mrb[0].mxu0
  %1202 = vmatprep.mubr.f32.mxu0 %v468
  %1203 = vmatmul.mubr.f32.gmra.mrb[0].mxu0 %v467
  %v1204 = vpop.f32.mrb[0].mxu0
  %v1205 = vadd.f32 %v820, %v1204
  %v1206 = vpop.f32.mrb[0].mxu0
  %1207 = vmatprep.mubr.f32.mxu0 %v472
  %1208 = vmatmul.mubr.f32.gmra.mrb[0].mxu0 %v471
  %v1209 = vpop.f32.mrb[0].mxu0
  %v1210 = vadd.f32 %v825, %v1209
  %v1211 = vpop.f32.mrb[0].mxu0
  %1212 = vmatprep.mubr.f32.mxu0 %v476
  %1213 = vmatmul.mubr.f32.gmra.mrb[0].mxu0 %v475
  %v1214 = vpop.f32.mrb[0].mxu0
  %v1215 = vadd.f32 %v830, %v1214
  %v1216 = vpop.f32.mrb[0].mxu0
  %1217 = vmatprep.mubr.f32.mxu0 %v480
  %1218 = vmatmul.mubr.f32.gmra.mrb[0].mxu0 %v479
  %v1219 = vpop.f32.mrb[0].mxu0
  %v1220 = vadd.f32 %v835, %v1219
  %v1221 = vpop.f32.mrb[0].mxu0
  %1222 = vmatprep.mubr.f32.mxu0 %v484
  %1223 = vmatmul.mubr.f32.gmra.mrb[0].mxu0 %v483
  %v1224 = vpop.f32.mrb[0].mxu0
  %v1225 = vadd.f32 %v840, %v1224
  %v1226 = vpop.f32.mrb[0].mxu0
  %1227 = vmatprep.mubr.f32.mxu0 %v488
  %1228 = vmatmul.mubr.f32.gmra.mrb[0].mxu0 %v487
  %v1229 = vpop.f32.mrb[0].mxu0
  %v1230 = vadd.f32 %v845, %v1229
  %v1231 = vpop.f32.mrb[0].mxu0
  %1232 = vmatprep.mubr.f32.mxu0 %v492
  %1233 = vmatmul.mubr.f32.gmra.mrb[0].mxu0 %v491
  %v1234 = vpop.f32.mrb[0].mxu0
  %v1235 = vadd.f32 %v850, %v1234
  %v1236 = vpop.f32.mrb[0].mxu0
  %1237 = vmatprep.mubr.f32.mxu0 %v496
  %1238 = vmatmul.mubr.f32.gmra.mrb[0].mxu0 %v495
  %v1239 = vpop.f32.mrb[0].mxu0
  %v1240 = vadd.f32 %v855, %v1239
  %v1241 = vpop.f32.mrb[0].mxu0
  %1242 = vmatprep.mubr.f32.mxu0 %v500
  %1243 = vmatmul.mubr.f32.gmra.mrb[0].mxu0 %v499
  %v1244 = vpop.f32.mrb[0].mxu0
  %v1245 = vadd.f32 %v860, %v1244
  %v1246 = vpop.f32.mrb[0].mxu0
  %1247 = vmatprep.mubr.f32.mxu0 %v504
  %1248 = vmatmul.mubr.f32.gmra.mrb[0].mxu0 %v503
  %v1249 = vpop.f32.mrb[0].mxu0
  %v1250 = vadd.f32 %v865, %v1249
  %v1251 = vpop.f32.mrb[0].mxu0
  %1252 = vmatprep.mubr.f32.mxu0 %v508
  %1253 = vmatmul.mubr.f32.gmra.mrb[0].mxu0 %v507
  %v1254 = vpop.f32.mrb[0].mxu0
  %v1255 = vadd.f32 %v870, %v1254
  %v1256 = vpop.f32.mrb[0].mxu0
  %1257 = vmatprep.mubr.f32.mxu0 %v512
  %1258 = vmatmul.mubr.f32.gmra.mrb[0].mxu0 %v511
  %v1259 = vpop.f32.mrb[0].mxu0
  %v1260 = vadd.f32 %v875, %v1259
  %v1261 = vpop.f32.mrb[0].mxu0
  %1262 = vmatprep.mubr.f32.mxu0 %v516
  %1263 = vmatmul.mubr.f32.gmra.mrb[0].mxu0 %v515
  %v1264 = vpop.f32.mrb[0].mxu0
  %v1265 = vadd.f32 %v880, %v1264
  %v1266 = vpop.f32.mrb[0].mxu0
  %1267 = vmatprep.mubr.f32.mxu0 %v520
  %1268 = vmatmul.mubr.f32.gmra.mrb[0].mxu0 %v519
  %v1269 = vpop.f32.mrb[0].mxu0
  %v1270 = vadd.f32 %v885, %v1269
  %v1271 = vpop.f32.mrb[0].mxu0
  %1272 = vmatprep.mubr.f32.mxu0 %v524
  %1273 = vmatmul.mubr.f32.gmra.mrb[0].mxu0 %v523
  %v1274 = vpop.f32.mrb[0].mxu0
  %v1275 = vadd.f32 %v890, %v1274
  %v1276 = vpop.f32.mrb[0].mxu0
  %1277 = vmatprep.mubr.f32.mxu0 %v528
  %1278 = vmatmul.mubr.f32.gmra.mrb[0].mxu0 %v527
  %v1279 = vpop.f32.mrb[0].mxu0
  %v1280 = vadd.f32 %v895, %v1279
  %v1281 = vpop.f32.mrb[0].mxu0
  %1282 = vmatprep.mubr.f32.mxu0 %v532
  %1283 = vmatmul.mubr.f32.gmra.mrb[0].mxu0 %v531
  %v1284 = vpop.f32.mrb[0].mxu0
  %v1285 = vadd.f32 %v900, %v1284
  %v1286 = vpop.f32.mrb[0].mxu0
  %1287 = vmatprep.mubr.f32.mxu0 %v536
  %1288 = vmatmul.mubr.f32.gmra.mrb[0].mxu0 %v535
  %v1289 = vpop.f32.mrb[0].mxu0
  %v1290 = vadd.f32 %v905, %v1289
  %v1291 = vpop.f32.mrb[0].mxu0
  %1292 = vmatprep.mubr.f32.mxu0 %v540
  %1293 = vmatmul.mubr.f32.gmra.mrb[0].mxu0 %v539
  %v1294 = vpop.f32.mrb[0].mxu0
  %v1295 = vadd.f32 %v910, %v1294
  %v1296 = vpop.f32.mrb[0].mxu0
  %1297 = vmatprep.mubr.f32.mxu0 %v544
  %1298 = vmatmul.mubr.f32.gmra.mrb[0].mxu0 %v543
  %v1299 = vpop.f32.mrb[0].mxu0
  %v1300 = vadd.f32 %v915, %v1299
  %v1301 = vpop.f32.mrb[0].mxu0
  %1302 = vmatprep.mubr.f32.mxu0 %v548
  %1303 = vmatmul.mubr.f32.gmra.mrb[0].mxu0 %v547
  %v1304 = vpop.f32.mrb[0].mxu0
  %v1305 = vadd.f32 %v920, %v1304
  %v1306 = vpop.f32.mrb[0].mxu0
  %1307 = vmatprep.mubr.f32.mxu0 %v552
  %1308 = vmatmul.mubr.f32.gmra.mrb[0].mxu0 %v551
  %v1309 = vpop.f32.mrb[0].mxu0
  %v1310 = vadd.f32 %v925, %v1309
  %v1311 = vpop.f32.mrb[0].mxu0
  %1312 = vmatprep.mubr.f32.mxu0 %v556
  %1313 = vmatmul.mubr.f32.gmra.mrb[0].mxu0 %v555
  %v1314 = vpop.f32.mrb[0].mxu0
  %v1315 = vadd.f32 %v930, %v1314
  %v1316 = vpop.f32.mrb[0].mxu0
  %1317 = vmatprep.mubr.f32.mxu0 %v560
  %1318 = vmatmul.mubr.f32.gmra.mrb[0].mxu0 %v559
  %v1319 = vpop.f32.mrb[0].mxu0
  %v1320 = vadd.f32 %v935, %v1319
  %v1321 = vpop.f32.mrb[0].mxu0
  %1322 = vmatprep.mubr.f32.mxu0 %v564
  %1323 = vmatmul.mubr.f32.gmra.mrb[0].mxu0 %v563
  %v1324 = vpop.f32.mrb[0].mxu0
  %v1325 = vadd.f32 %v940, %v1324
  %v1326 = vpop.f32.mrb[0].mxu0
  %1327 = vmatprep.mubr.f32.mxu0 %v568
  %1328 = vmatmul.mubr.f32.gmra.mrb[0].mxu0 %v567
  %v1329 = vpop.f32.mrb[0].mxu0
  %v1330 = vadd.f32 %v945, %v1329
  %v1331 = vpop.f32.mrb[0].mxu0
  %1332 = vmatprep.mubr.f32.mxu0 %v572
  %1333 = vmatmul.mubr.f32.gmra.mrb[0].mxu0 %v571
  %v1334 = vpop.f32.mrb[0].mxu0
  %v1335 = vadd.f32 %v950, %v1334
  %v1336 = vpop.f32.mrb[0].mxu0
  %1337 = vmatprep.mubr.f32.mxu0 %v576
  %1338 = vmatmul.mubr.f32.gmra.mrb[0].mxu0 %v575
  %v1339 = vpop.f32.mrb[0].mxu0
  %v1340 = vadd.f32 %v955, %v1339
  %v1341 = vpop.f32.mrb[0].mxu0
  %1342 = vmatprep.mubr.f32.mxu0 %v580
  %1343 = vmatmul.mubr.f32.gmra.mrb[0].mxu0 %v579
  %v1344 = vpop.f32.mrb[0].mxu0
  %v1345 = vadd.f32 %v960, %v1344
  %v1346 = vpop.f32.mrb[0].mxu0
  %1347 = vmatprep.mubr.f32.mxu0 %v584
  %1348 = vmatmul.mubr.f32.gmra.mrb[0].mxu0 %v583
  %v1349 = vpop.f32.mrb[0].mxu0
  %v1350 = vadd.f32 %v965, %v1349
  %v1351 = vpop.f32.mrb[0].mxu0
  %1352 = vmatprep.mubr.f32.mxu0 %v588
  %1353 = vmatmul.mubr.f32.gmra.mrb[0].mxu0 %v587
  %v1354 = vpop.f32.mrb[0].mxu0
  %v1355 = vadd.f32 %v970, %v1354
  %v1356 = vpop.f32.mrb[0].mxu0
  %1357 = vmatprep.mubr.f32.mxu0 %v592
  %1358 = vmatmul.mubr.f32.gmra.mrb[0].mxu0 %v591
  %v1359 = vpop.f32.mrb[0].mxu0
  %v1360 = vadd.f32 %v975, %v1359
  %v1361 = vpop.f32.mrb[0].mxu0
  %1362 = vdwg.mxu0
  %v1363 = vadd.f32 %v145, %v1045
  %v1364 = vadd.f32 %v146, %v1050
  %v1365 = vadd.f32 %v147, %v1055
  %v1366 = vadd.f32 %v148, %v1060
  %v1367 = vadd.f32 %v149, %v1065
  %v1368 = vadd.f32 %v150, %v1070
  %v1369 = vadd.f32 %v151, %v1075
  %v1370 = vadd.f32 %v152, %v1080
  %v1371 = vadd.f32 %v153, %v1085
  %v1372 = vadd.f32 %v154, %v1090
  %v1373 = vadd.f32 %v155, %v1095
  %v1374 = vadd.f32 %v156, %v1100
  %v1375 = vadd.f32 %v157, %v1105
  %v1376 = vadd.f32 %v158, %v1110
  %v1377 = vadd.f32 %v159, %v1115
  %v1378 = vadd.f32 %v160, %v1120
  %v1379 = vadd.f32 %v161, %v1125
  %v1380 = vadd.f32 %v162, %v1130
  %v1381 = vadd.f32 %v163, %v1135
  %v1382 = vadd.f32 %v164, %v1140
  %v1383 = vadd.f32 %v165, %v1145
  %v1384 = vadd.f32 %v166, %v1150
  %v1385 = vadd.f32 %v167, %v1155
  %v1386 = vadd.f32 %v168, %v1160
  %v1387 = vadd.f32 %v169, %v1165
  %v1388 = vadd.f32 %v170, %v1170
  %v1389 = vadd.f32 %v171, %v1175
  %v1390 = vadd.f32 %v172, %v1180
  %v1391 = vadd.f32 %v173, %v1185
  %v1392 = vadd.f32 %v174, %v1190
  %v1393 = vadd.f32 %v175, %v1195
  %v1394 = vadd.f32 %v176, %v1200
  %v1395 = vadd.f32 %v177, %v1205
  %v1396 = vadd.f32 %v178, %v1210
  %v1397 = vadd.f32 %v179, %v1215
  %v1398 = vadd.f32 %v180, %v1220
  %v1399 = vadd.f32 %v181, %v1225
  %v1400 = vadd.f32 %v182, %v1230
  %v1401 = vadd.f32 %v183, %v1235
  %v1402 = vadd.f32 %v184, %v1240
  %v1403 = vadd.f32 %v185, %v1245
  %v1404 = vadd.f32 %v186, %v1250
  %v1405 = vadd.f32 %v187, %v1255
  %v1406 = vadd.f32 %v188, %v1260
  %v1407 = vadd.f32 %v189, %v1265
  %v1408 = vadd.f32 %v190, %v1270
  %v1409 = vadd.f32 %v191, %v1275
  %v1410 = vadd.f32 %v192, %v1280
  %v1411 = vadd.f32 %v193, %v1285
  %v1412 = vadd.f32 %v194, %v1290
  %v1413 = vadd.f32 %v195, %v1295
  %v1414 = vadd.f32 %v196, %v1300
  %v1415 = vadd.f32 %v197, %v1305
  %v1416 = vadd.f32 %v198, %v1310
  %v1417 = vadd.f32 %v199, %v1315
  %v1418 = vadd.f32 %v200, %v1320
  %v1419 = vadd.f32 %v201, %v1325
  %v1420 = vadd.f32 %v202, %v1330
  %v1421 = vadd.f32 %v203, %v1335
  %v1422 = vadd.f32 %v204, %v1340
  %v1423 = vadd.f32 %v205, %v1345
  %v1424 = vadd.f32 %v206, %v1350
  %v1425 = vadd.f32 %v207, %v1355
  %v1426 = vadd.f32 %v208, %v1360
  %1427 = vst [vmem:[%s2] sm:$0xff] %v1363
  %1428 = vst [vmem:[%s2 + $0x8] sm:$0xff] %v1364
  %1429 = vst [vmem:[%s2 + $0x10] sm:$0xff] %v1365
  %1430 = vst [vmem:[%s2 + $0x18] sm:$0xff] %v1366
  %1431 = vst [vmem:[%s2 + $0x20] sm:$0xff] %v1367
  %1432 = vst [vmem:[%s2 + $0x28] sm:$0xff] %v1368
  %1433 = vst [vmem:[%s2 + $0x30] sm:$0xff] %v1369
  %1434 = vst [vmem:[%s2 + $0x38] sm:$0xff] %v1370
  %1435 = vst [vmem:[%s2 + $0x40] sm:$0xff] %v1371
  %1436 = vst [vmem:[%s2 + $0x48] sm:$0xff] %v1372
  %1437 = vst [vmem:[%s2 + $0x50] sm:$0xff] %v1373
  %1438 = vst [vmem:[%s2 + $0x58] sm:$0xff] %v1374
  %1439 = vst [vmem:[%s2 + $0x60] sm:$0xff] %v1375
  %1440 = vst [vmem:[%s2 + $0x68] sm:$0xff] %v1376
  %1441 = vst [vmem:[%s2 + $0x70] sm:$0xff] %v1377
  %1442 = vst [vmem:[%s2 + $0x78] sm:$0xff] %v1378
  %1443 = vst [vmem:[%s2 + $0x80] sm:$0xff] %v1379
  %1444 = vst [vmem:[%s2 + $0x88] sm:$0xff] %v1380
  %1445 = vst [vmem:[%s2 + $0x90] sm:$0xff] %v1381
  %1446 = vst [vmem:[%s2 + $0x98] sm:$0xff] %v1382
  %1447 = vst [vmem:[%s2 + $0xa0] sm:$0xff] %v1383
  %1448 = vst [vmem:[%s2 + $0xa8] sm:$0xff] %v1384
  %1449 = vst [vmem:[%s2 + $0xb0] sm:$0xff] %v1385
  %1450 = vst [vmem:[%s2 + $0xb8] sm:$0xff] %v1386
  %1451 = vst [vmem:[%s2 + $0xc0] sm:$0xff] %v1387
  %1452 = vst [vmem:[%s2 + $0xc8] sm:$0xff] %v1388
  %1453 = vst [vmem:[%s2 + $0xd0] sm:$0xff] %v1389
  %1454 = vst [vmem:[%s2 + $0xd8] sm:$0xff] %v1390
  %1455 = vst [vmem:[%s2 + $0xe0] sm:$0xff] %v1391
  %1456 = vst [vmem:[%s2 + $0xe8] sm:$0xff] %v1392
  %1457 = vst [vmem:[%s2 + $0xf0] sm:$0xff] %v1393
  %1458 = vst [vmem:[%s2 + $0xf8] sm:$0xff] %v1394
  %1459 = vst [vmem:[%s2 + $0x100] sm:$0xff] %v1395
  %1460 = vst [vmem:[%s2 + $0x108] sm:$0xff] %v1396
  %1461 = vst [vmem:[%s2 + $0x110] sm:$0xff] %v1397
  %1462 = vst [vmem:[%s2 + $0x118] sm:$0xff] %v1398
  %1463 = vst [vmem:[%s2 + $0x120] sm:$0xff] %v1399
  %1464 = vst [vmem:[%s2 + $0x128] sm:$0xff] %v1400
  %1465 = vst [vmem:[%s2 + $0x130] sm:$0xff] %v1401
  %1466 = vst [vmem:[%s2 + $0x138] sm:$0xff] %v1402
  %1467 = vst [vmem:[%s2 + $0x140] sm:$0xff] %v1403
  %1468 = vst [vmem:[%s2 + $0x148] sm:$0xff] %v1404
  %1469 = vst [vmem:[%s2 + $0x150] sm:$0xff] %v1405
  %1470 = vst [vmem:[%s2 + $0x158] sm:$0xff] %v1406
  %1471 = vst [vmem:[%s2 + $0x160] sm:$0xff] %v1407
  %1472 = vst [vmem:[%s2 + $0x168] sm:$0xff] %v1408
  %1473 = vst [vmem:[%s2 + $0x170] sm:$0xff] %v1409
  %1474 = vst [vmem:[%s2 + $0x178] sm:$0xff] %v1410
  %1475 = vst [vmem:[%s2 + $0x180] sm:$0xff] %v1411
  %1476 = vst [vmem:[%s2 + $0x188] sm:$0xff] %v1412
  %1477 = vst [vmem:[%s2 + $0x190] sm:$0xff] %v1413
  %1478 = vst [vmem:[%s2 + $0x198] sm:$0xff] %v1414
  %1479 = vst [vmem:[%s2 + $0x1a0] sm:$0xff] %v1415
  %1480 = vst [vmem:[%s2 + $0x1a8] sm:$0xff] %v1416
  %1481 = vst [vmem:[%s2 + $0x1b0] sm:$0xff] %v1417
  %1482 = vst [vmem:[%s2 + $0x1b8] sm:$0xff] %v1418
  %1483 = vst [vmem:[%s2 + $0x1c0] sm:$0xff] %v1419
  %1484 = vst [vmem:[%s2 + $0x1c8] sm:$0xff] %v1420
  %1485 = vst [vmem:[%s2 + $0x1d0] sm:$0xff] %v1421
  %1486 = vst [vmem:[%s2 + $0x1d8] sm:$0xff] %v1422
  %1487 = vst [vmem:[%s2 + $0x1e0] sm:$0xff] %v1423
  %1488 = vst [vmem:[%s2 + $0x1e8] sm:$0xff] %v1424
  %1489 = vst [vmem:[%s2 + $0x1f0] sm:$0xff] %v1425
  %1490 = vst [vmem:[%s2 + $0x1f8] sm:$0xff] %v1426
  // Predicated region
  $region14: #{graph_conv_forward.7} parent=0 // pred_check
    _
  $region15: #{graph_conv_forward.7} parent=0 // pred_check_branch
    %1492 = sbr.rel (0) target = $region17
  $region16: #{graph_conv_forward.7} parent=0 // pred_region
    _
  $region17: #{graph_conv_forward.7} parent=0 // pred_fallthru
    _
  // Predicated region
  $region18: #{graph_conv_forward.7} parent=0 // pred_check
    _
  $region19: #{graph_conv_forward.7} parent=0 // pred_check_branch
    %1494 = sbr.rel (0) target = $region21
  $region20: #{graph_conv_forward.7} parent=0 // pred_region
    _
  $region21: #{graph_conv_forward.7} parent=0 // pred_fallthru
    _

</llo_original>
